<compile_context>
chip_gen: v6e
topology: v6e:2x2x1
jax: 0.10.0
libtpu: 0.0.40
codegen_flags: <defaults>
</compile_context>

<pallas_src>
import functools

import jax
import jax.numpy as jnp
import numpy as np
from jax.experimental import pallas as pl
from jax.experimental.pallas import tpu as pltpu


# ------------------------------- fused CBAM kernel -------------------------------
def _cbam_kernel(x_ref, w1_ref, w2_ref, wconv_ref, o_ref, stat_scr,
                 *, H, W, K, P, FP, SPAD):
    C, HW = x_ref.shape

    x = x_ref[...].astype(jnp.float32)                       # (C, H*W) lane-dense

    # ---------------- channel attention (shared MLP, batched) ----------------
    mx = jnp.max(x, axis=1, keepdims=True)                   # (C,1) AdaptiveMaxPool2d(1)
    av = jnp.sum(x, axis=1, keepdims=True) * (1.0 / HW)      # (C,1) AdaptiveAvgPool2d(1)
    v = jnp.concatenate([mx, av], axis=1)                    # (C,2) both pools at once
    h = jnp.maximum(
        jnp.dot(w1_ref[...], v, preferred_element_type=jnp.float32), 0.0)   # (Cr,2)
    o = jnp.dot(w2_ref[...], h, preferred_element_type=jnp.float32)         # (C,2)
    gate = jax.nn.sigmoid(o[:, 0:1] + o[:, 1:2])             # (C,1) channel gate
    chan = x * gate                                          # (C,HW) gated features

    # ------ channel-wise max/mean maps -> zero-haloed flat VMEM scratch ------
    # Halo is re-zeroed every grid step (cheap: 2 rows) so the kernel stays
    # correct when the grid is split across TensorCores (per-core scratch).
    stat_scr[:, 0:FP] = jnp.zeros((2, FP), jnp.float32)
    stat_scr[:, FP + HW:SPAD] = jnp.zeros((2, SPAD - FP - HW), jnp.float32)
    stat_scr[0:1, FP:FP + HW] = jnp.max(chan, axis=0, keepdims=True)
    stat_scr[1:2, FP:FP + HW] = jnp.sum(chan, axis=0, keepdims=True) * (1.0 / C)

    # ------------------------------ KxK spatial conv ------------------------------
    # Output pixel (i,j) needs stat2d[i+dh-P, j+dw-P]; in flat coordinates that
    # is a static lane shift of (dh-P)*W + (dw-P).  The scratch halo supplies
    # the vertical zero padding; the per-dw column mask the horizontal one.
    # The mask depends only on dw, so it is applied once per dw (7 multiplies)
    # instead of once per tap (98).
    col = jax.lax.broadcasted_iota(jnp.int32, (1, HW), 1) % W

    acc = jnp.zeros((1, HW), jnp.float32)
    for dw in range(K):
        d = dw - P
        col_mask = jnp.logical_and(col + d >= 0, col + d < W).astype(jnp.float32)
        acc_dw = jnp.zeros((1, HW), jnp.float32)
        for c in range(2):                  # 2 input channels (max, mean)
            for dh in range(K):
                off = FP + (dh - P) * W + d
                wv = wconv_ref[c * K * K + dh * K + dw]          # SMEM scalar weight
                acc_dw = acc_dw + wv * stat_scr[c:c + 1, off:off + HW]
        acc = acc + col_mask * acc_dw

    sp = jax.nn.sigmoid(acc)                                 # (1,HW) spatial gate
    o_ref[...] = (chan * sp).astype(o_ref.dtype)             # lane-dense store


# ---------------------------------------- wrapper ----------------------------------------
def cbam_forward(x, w1, w2, wconv):
    """x: (B,C,H,W) f32; w1: (Cr,C); w2: (C,Cr); wconv: (1,2,K,K)."""
    B, C, H, W = x.shape
    Cr = w1.shape[0]
    K = wconv.shape[-1]
    P = K // 2
    HW = H * W

    # Lane-aligned halo covering the largest flat shift P*W + P; keeps the
    # stat-row store lane-aligned and every tap read in-bounds.
    FP = ((P * (W + 1) + 127) // 128) * 128
    SPAD = 2 * FP + ((HW + 127) // 128) * 128

    x_flat = x.reshape(B, C, HW)                          # layout plumbing (free reshape)
    wconv_flat = wconv.reshape(-1).astype(jnp.float32)    # (2*K*K,) scalars in SMEM

    kernel = functools.partial(_cbam_kernel, H=H, W=W, K=K, P=P, FP=FP, SPAD=SPAD)

    out_flat = pl.pallas_call(
        kernel,
        out_shape=jax.ShapeDtypeStruct((B, C, HW), x.dtype),
        grid=(B,),
        in_specs=[
            pl.BlockSpec((None, C, HW), lambda b: (b, 0, 0)),
            pl.BlockSpec((Cr, C), lambda b: (0, 0)),
            pl.BlockSpec((C, Cr), lambda b: (0, 0)),
            pl.BlockSpec(memory_space=pltpu.MemorySpace.SMEM),
        ],
        out_specs=pl.BlockSpec((None, C, HW), lambda b: (b, 0, 0)),
        scratch_shapes=[pltpu.VMEM((2, SPAD), jnp.float32)],
        compiler_params=pltpu.CompilerParams(
            dimension_semantics=("parallel",)),
        # TODO(synk): at production feature-map sizes (e.g. C=512, H=W=56) tile the
        # flattened spatial dim and set vmem_limit_bytes for v7x's 64 MiB VMEM.
    )(x_flat, w1, w2, wconv_flat)

    return out_flat.reshape(B, C, H, W)


# ---------------------------------- pure-JAX reference ----------------------------------
def cbam_reference(x, w1, w2, wconv):
    mx = jnp.max(x, axis=(2, 3), keepdims=True)
    av = jnp.mean(x, axis=(2, 3), keepdims=True)

    def mlp(v):  # (B,C,1,1)
        v2 = v[:, :, 0, 0]
        h = jnp.maximum(v2 @ w1.T, 0.0)
        return (h @ w2.T)[:, :, None, None]

    ch = jax.nn.sigmoid(mlp(mx) + mlp(av))
    chan = ch * x
    mc = jnp.max(chan, axis=1, keepdims=True)
    ac = jnp.mean(chan, axis=1, keepdims=True)
    cat = jnp.concatenate([mc, ac], axis=1)
    conv = jax.lax.conv_general_dilated(
        cat, wconv, window_strides=(1, 1), padding="SAME",
        dimension_numbers=("NCHW", "OIHW", "NCHW"))
    sp = jax.nn.sigmoid(conv)
    return sp * chan


if __name__ == "__main__":
    B, C, H, W = 2, 32, 16, 16
    reduction, K = 16, 7
    Cr = C // reduction

    key = jax.random.PRNGKey(0)
    kx, k1, k2, kc = jax.random.split(key, 4)
    x = jax.random.normal(kx, (B, C, H, W), dtype=jnp.float32)
    # nn.Conv2d(C, Cr, 1, bias=False) weight (Cr,C,1,1) -> (Cr,C); etc.
    w1 = 0.1 * jax.random.normal(k1, (Cr, C), dtype=jnp.float32)
    w2 = 0.1 * jax.random.normal(k2, (C, Cr), dtype=jnp.float32)
    wconv = 0.1 * jax.random.normal(kc, (1, 2, K, K), dtype=jnp.float32)

    out = jax.block_until_ready(cbam_forward(x, w1, w2, wconv))
    ref = jax.block_until_ready(cbam_reference(x, w1, w2, wconv))

    np.testing.assert_allclose(np.asarray(out), np.asarray(ref), rtol=1e-4, atol=1e-5)
    print("KERNEL_OK")
</pallas_src>

<mosaic_0001>
module attributes {stable_mosaic.version = 11 : i64} {
  func.func @_cbam_kernel(%arg0: i32, %arg1: memref<1x32x256xf32, #tpu.memory_space<vmem>>, %arg2: memref<2x32xf32, #tpu.memory_space<vmem>>, %arg3: memref<32x2xf32, #tpu.memory_space<vmem>>, %arg4: memref<98xf32, #tpu.memory_space<smem>>, %arg5: memref<1x32x256xf32, #tpu.memory_space<vmem>>, %arg6: memref<2x512xf32, #tpu.memory_space<vmem>>) attributes {dimension_semantics = [#tpu.dimension_semantics<parallel>], iteration_bounds = array<i64: 2>, scalar_prefetch = 0 : i64, scratch_operands = 1 : i64, tpu.core_type = #tpu.core_type<tc>, window_params = [{transform_indices = @transform_0, window_bounds = array<i64: 1, 32, 256>}, {pipeline_mode = #tpu.pipeline_mode<synchronous>, transform_indices = @transform_1, window_bounds = array<i64: 2, 32>}, {pipeline_mode = #tpu.pipeline_mode<synchronous>, transform_indices = @transform_2, window_bounds = array<i64: 32, 2>}, {transform_indices = @transform_3, window_bounds = array<i64: 98>}, {transform_indices = @transform_4, window_bounds = array<i64: 1, 32, 256>}]} {
    %c0 = arith.constant 0 : index
    %c0_0 = arith.constant 0 : index
    %c0_1 = arith.constant 0 : index
    %0 = vector.load %arg1[%c0, %c0_0, %c0_1] : memref<1x32x256xf32, #tpu.memory_space<vmem>>, vector<1x32x256xf32>
    %1 = vector.shape_cast %0 : vector<1x32x256xf32> to vector<32x256xf32>
    %cst = arith.constant dense<0xFF800000> : vector<32xf32>
    %2 = vector.multi_reduction <maximumf>, %1, %cst [1] : vector<32x256xf32> to vector<32xf32>
    %3 = vector.shape_cast %2 : vector<32xf32> to vector<32x1xf32>
    %cst_2 = arith.constant dense<0.000000e+00> : vector<32xf32>
    %4 = vector.multi_reduction <add>, %1, %cst_2 [1] : vector<32x256xf32> to vector<32xf32>
    %5 = vector.shape_cast %4 : vector<32xf32> to vector<32x1xf32>
    %cst_3 = arith.constant 3.906250e-03 : f32
    %6 = vector.broadcast %cst_3 : f32 to vector<32x1xf32>
    %7 = arith.mulf %5, %6 : vector<32x1xf32>
    %8 = tpu.concatenate %3, %7 in 1 : vector<32x1xf32>, vector<32x1xf32> -> vector<32x2xf32>
    %c0_4 = arith.constant 0 : index
    %c0_5 = arith.constant 0 : index
    %9 = vector.load %arg2[%c0_4, %c0_5] : memref<2x32xf32, #tpu.memory_space<vmem>>, vector<2x32xf32>
    %cst_6 = arith.constant dense<0.000000e+00> : vector<2x2xf32>
    %10 = tpu.matmul %9, %8, %cst_6 {dimension_numbers = #tpu.dot_dimension_numbers<[1], [0], [0], [1], [0, 0, 1, 1], [], []>} : vector<2x32xf32>, vector<32x2xf32>, vector<2x2xf32> -> vector<2x2xf32>
    %cst_7 = arith.constant 0.000000e+00 : f32
    %11 = vector.broadcast %cst_7 : f32 to vector<2x2xf32>
    %12 = arith.maximumf %10, %11 : vector<2x2xf32>
    %c0_8 = arith.constant 0 : index
    %c0_9 = arith.constant 0 : index
    %13 = vector.load %arg3[%c0_8, %c0_9] : memref<32x2xf32, #tpu.memory_space<vmem>>, vector<32x2xf32>
    %cst_10 = arith.constant dense<0.000000e+00> : vector<32x2xf32>
    %14 = tpu.matmul %13, %12, %cst_10 {dimension_numbers = #tpu.dot_dimension_numbers<[1], [0], [0], [1], [0, 0, 1, 1], [], []>} : vector<32x2xf32>, vector<2x2xf32>, vector<32x2xf32> -> vector<32x2xf32>
    %15 = vector.extract_strided_slice %14 {offsets = [0, 0], sizes = [32, 1], strides = [1, 1]} : vector<32x2xf32> to vector<32x1xf32>
    %16 = vector.extract_strided_slice %14 {offsets = [0, 1], sizes = [32, 1], strides = [1, 1]} : vector<32x2xf32> to vector<32x1xf32>
    %17 = arith.addf %15, %16 : vector<32x1xf32>
    %18 = arith.negf %17 : vector<32x1xf32>
    %19 = math.exp %18 : vector<32x1xf32>
    %cst_11 = arith.constant 1.000000e+00 : f32
    %20 = vector.broadcast %cst_11 : f32 to vector<32x1xf32>
    %21 = arith.addf %20, %19 : vector<32x1xf32>
    %22 = arith.divf %20, %21 : vector<32x1xf32>
    %23 = vector.broadcast %22 : vector<32x1xf32> to vector<32x256xf32>
    %24 = arith.mulf %1, %23 : vector<32x256xf32>
    %cst_12 = arith.constant 0.000000e+00 : f32
    %25 = vector.broadcast %cst_12 : f32 to vector<2x128xf32>
    %c0_13 = arith.constant 0 : index
    %c0_14 = arith.constant 0 : index
    %26 = vector.load %arg6[%c0_13, %c0_14] : memref<2x512xf32, #tpu.memory_space<vmem>>, vector<2x128xf32>
    tpu.vector_store %arg6[%c0_13, %c0_14], %25 {strides = array<i32>} : memref<2x512xf32, #tpu.memory_space<vmem>>, vector<2x128xf32>,
    %cst_15 = arith.constant 0.000000e+00 : f32
    %27 = vector.broadcast %cst_15 : f32 to vector<2x128xf32>
    %c0_16 = arith.constant 0 : index
    %c384 = arith.constant 384 : index
    %28 = vector.load %arg6[%c0_16, %c384] : memref<2x512xf32, #tpu.memory_space<vmem>>, vector<2x128xf32>
    tpu.vector_store %arg6[%c0_16, %c384], %27 {strides = array<i32>} : memref<2x512xf32, #tpu.memory_space<vmem>>, vector<2x128xf32>,
    %cst_17 = arith.constant dense<0xFF800000> : vector<256xf32>
    %29 = vector.multi_reduction <maximumf>, %24, %cst_17 [0] : vector<32x256xf32> to vector<256xf32>
    %30 = vector.shape_cast %29 : vector<256xf32> to vector<1x256xf32>
    %c0_18 = arith.constant 0 : index
    %c128 = arith.constant 128 : index
    %31 = vector.load %arg6[%c0_18, %c128] : memref<2x512xf32, #tpu.memory_space<vmem>>, vector<1x256xf32>
    tpu.vector_store %arg6[%c0_18, %c128], %30 {strides = array<i32>} : memref<2x512xf32, #tpu.memory_space<vmem>>, vector<1x256xf32>,
    %cst_19 = arith.constant dense<0.000000e+00> : vector<256xf32>
    %32 = vector.multi_reduction <add>, %24, %cst_19 [0] : vector<32x256xf32> to vector<256xf32>
    %33 = vector.shape_cast %32 : vector<256xf32> to vector<1x256xf32>
    %cst_20 = arith.constant 3.125000e-02 : f32
    %34 = vector.broadcast %cst_20 : f32 to vector<1x256xf32>
    %35 = arith.mulf %33, %34 : vector<1x256xf32>
    %c1 = arith.constant 1 : index
    %c128_21 = arith.constant 128 : index
    %36 = vector.load %arg6[%c1, %c128_21] : memref<2x512xf32, #tpu.memory_space<vmem>>, vector<1x256xf32>
    tpu.vector_store %arg6[%c1, %c128_21], %35 {strides = array<i32>} : memref<2x512xf32, #tpu.memory_space<vmem>>, vector<1x256xf32>,
    %37 = tpu.iota {dimensions = array<i32: 1>} : vector<1x256xi32>
    %c16_i32 = arith.constant 16 : i32
    %c0_i32 = arith.constant 0 : i32
    %38 = arith.cmpi eq, %c16_i32, %c0_i32 : i32
    %c1_i32 = arith.constant 1 : i32
    %39 = arith.select %38, %c1_i32, %c16_i32 : i32
    %40 = vector.broadcast %39 : i32 to vector<1x256xi32>
    %41 = arith.remsi %37, %40 : vector<1x256xi32>
    %c0_i32_22 = arith.constant 0 : i32
    %42 = vector.broadcast %c0_i32_22 : i32 to vector<1x256xi32>
    %43 = arith.cmpi ne, %41, %42 : vector<1x256xi32>
    %c0_i32_23 = arith.constant 0 : i32
    %44 = vector.broadcast %c0_i32_23 : i32 to vector<1x256xi32>
    %45 = arith.cmpi slt, %41, %44 : vector<1x256xi32>
    %c0_i32_24 = arith.constant 0 : i32
    %46 = arith.cmpi slt, %39, %c0_i32_24 : i32
    %47 = vector.broadcast %46 : i1 to vector<1x256xi1>
    %48 = vector.broadcast %47 : vector<1x256xi1> to vector<1x256xi1>
    %49 = arith.xori %45, %48 : vector<1x256xi1>
    %50 = arith.andi %49, %43 : vector<1x256xi1>
    %51 = vector.broadcast %39 : i32 to vector<1x256xi32>
    %52 = arith.addi %41, %51 : vector<1x256xi32>
    %53 = arith.select %50, %52, %41 : vector<1x256xi1>, vector<1x256xi32>
    %cst_25 = arith.constant 0.000000e+00 : f32
    %54 = vector.broadcast %cst_25 : f32 to vector<1x256xf32>
    %c-3_i32 = arith.constant -3 : i32
    %55 = vector.broadcast %c-3_i32 : i32 to vector<1x256xi32>
    %56 = arith.addi %53, %55 : vector<1x256xi32>
    %c0_i32_26 = arith.constant 0 : i32
    %57 = vector.broadcast %c0_i32_26 : i32 to vector<1x256xi32>
    %58 = arith.cmpi sge, %56, %57 : vector<1x256xi32>
    %c-3_i32_27 = arith.constant -3 : i32
    %59 = vector.broadcast %c-3_i32_27 : i32 to vector<1x256xi32>
    %60 = arith.addi %53, %59 : vector<1x256xi32>
    %c16_i32_28 = arith.constant 16 : i32
    %61 = vector.broadcast %c16_i32_28 : i32 to vector<1x256xi32>
    %62 = arith.cmpi slt, %60, %61 : vector<1x256xi32>
    %63 = arith.andi %58, %62 : vector<1x256xi1>
    %64 = arith.extui %63 : vector<1x256xi1> to vector<1x256xi32>
    %65 = arith.sitofp %64 : vector<1x256xi32> to vector<1x256xf32>
    %cst_29 = arith.constant 0.000000e+00 : f32
    %66 = vector.broadcast %cst_29 : f32 to vector<1x256xf32>
    %c0_30 = arith.constant 0 : index
    %67 = memref.load %arg4[%c0_30] : memref<98xf32, #tpu.memory_space<smem>>
    %c0_31 = arith.constant 0 : index
    %c77 = arith.constant 77 : index
    %68 = vector.load %arg6[%c0_31, %c77] : memref<2x512xf32, #tpu.memory_space<vmem>>, vector<1x256xf32>
    %69 = vector.broadcast %67 : f32 to vector<1x256xf32>
    %70 = arith.mulf %69, %68 : vector<1x256xf32>
    %71 = arith.addf %66, %70 : vector<1x256xf32>
    %c7 = arith.constant 7 : index
    %72 = memref.load %arg4[%c7] : memref<98xf32, #tpu.memory_space<smem>>
    %c0_32 = arith.constant 0 : index
    %c93 = arith.constant 93 : index
    %73 = vector.load %arg6[%c0_32, %c93] : memref<2x512xf32, #tpu.memory_space<vmem>>, vector<1x256xf32>
    %74 = vector.broadcast %72 : f32 to vector<1x256xf32>
    %75 = arith.mulf %74, %73 : vector<1x256xf32>
    %76 = arith.addf %71, %75 : vector<1x256xf32>
    %c14 = arith.constant 14 : index
    %77 = memref.load %arg4[%c14] : memref<98xf32, #tpu.memory_space<smem>>
    %c0_33 = arith.constant 0 : index
    %c109 = arith.constant 109 : index
    %78 = vector.load %arg6[%c0_33, %c109] : memref<2x512xf32, #tpu.memory_space<vmem>>, vector<1x256xf32>
    %79 = vector.broadcast %77 : f32 to vector<1x256xf32>
    %80 = arith.mulf %79, %78 : vector<1x256xf32>
    %81 = arith.addf %76, %80 : vector<1x256xf32>
    %c21 = arith.constant 21 : index
    %82 = memref.load %arg4[%c21] : memref<98xf32, #tpu.memory_space<smem>>
    %c0_34 = arith.constant 0 : index
    %c125 = arith.constant 125 : index
    %83 = vector.load %arg6[%c0_34, %c125] : memref<2x512xf32, #tpu.memory_space<vmem>>, vector<1x256xf32>
    %84 = vector.broadcast %82 : f32 to vector<1x256xf32>
    %85 = arith.mulf %84, %83 : vector<1x256xf32>
    %86 = arith.addf %81, %85 : vector<1x256xf32>
    %c28 = arith.constant 28 : index
    %87 = memref.load %arg4[%c28] : memref<98xf32, #tpu.memory_space<smem>>
    %c0_35 = arith.constant 0 : index
    %c141 = arith.constant 141 : index
    %88 = vector.load %arg6[%c0_35, %c141] : memref<2x512xf32, #tpu.memory_space<vmem>>, vector<1x256xf32>
    %89 = vector.broadcast %87 : f32 to vector<1x256xf32>
    %90 = arith.mulf %89, %88 : vector<1x256xf32>
    %91 = arith.addf %86, %90 : vector<1x256xf32>
    %c35 = arith.constant 35 : index
    %92 = memref.load %arg4[%c35] : memref<98xf32, #tpu.memory_space<smem>>
    %c0_36 = arith.constant 0 : index
    %c157 = arith.constant 157 : index
    %93 = vector.load %arg6[%c0_36, %c157] : memref<2x512xf32, #tpu.memory_space<vmem>>, vector<1x256xf32>
    %94 = vector.broadcast %92 : f32 to vector<1x256xf32>
    %95 = arith.mulf %94, %93 : vector<1x256xf32>
    %96 = arith.addf %91, %95 : vector<1x256xf32>
    %c42 = arith.constant 42 : index
    %97 = memref.load %arg4[%c42] : memref<98xf32, #tpu.memory_space<smem>>
    %c0_37 = arith.constant 0 : index
    %c173 = arith.constant 173 : index
    %98 = vector.load %arg6[%c0_37, %c173] : memref<2x512xf32, #tpu.memory_space<vmem>>, vector<1x256xf32>
    %99 = vector.broadcast %97 : f32 to vector<1x256xf32>
    %100 = arith.mulf %99, %98 : vector<1x256xf32>
    %101 = arith.addf %96, %100 : vector<1x256xf32>
    %c49 = arith.constant 49 : index
    %102 = memref.load %arg4[%c49] : memref<98xf32, #tpu.memory_space<smem>>
    %c1_38 = arith.constant 1 : index
    %c77_39 = arith.constant 77 : index
    %103 = vector.load %arg6[%c1_38, %c77_39] : memref<2x512xf32, #tpu.memory_space<vmem>>, vector<1x256xf32>
    %104 = vector.broadcast %102 : f32 to vector<1x256xf32>
    %105 = arith.mulf %104, %103 : vector<1x256xf32>
    %106 = arith.addf %101, %105 : vector<1x256xf32>
    %c56 = arith.constant 56 : index
    %107 = memref.load %arg4[%c56] : memref<98xf32, #tpu.memory_space<smem>>
    %c1_40 = arith.constant 1 : index
    %c93_41 = arith.constant 93 : index
    %108 = vector.load %arg6[%c1_40, %c93_41] : memref<2x512xf32, #tpu.memory_space<vmem>>, vector<1x256xf32>
    %109 = vector.broadcast %107 : f32 to vector<1x256xf32>
    %110 = arith.mulf %109, %108 : vector<1x256xf32>
    %111 = arith.addf %106, %110 : vector<1x256xf32>
    %c63 = arith.constant 63 : index
    %112 = memref.load %arg4[%c63] : memref<98xf32, #tpu.memory_space<smem>>
    %c1_42 = arith.constant 1 : index
    %c109_43 = arith.constant 109 : index
    %113 = vector.load %arg6[%c1_42, %c109_43] : memref<2x512xf32, #tpu.memory_space<vmem>>, vector<1x256xf32>
    %114 = vector.broadcast %112 : f32 to vector<1x256xf32>
    %115 = arith.mulf %114, %113 : vector<1x256xf32>
    %116 = arith.addf %111, %115 : vector<1x256xf32>
    %c70 = arith.constant 70 : index
    %117 = memref.load %arg4[%c70] : memref<98xf32, #tpu.memory_space<smem>>
    %c1_44 = arith.constant 1 : index
    %c125_45 = arith.constant 125 : index
    %118 = vector.load %arg6[%c1_44, %c125_45] : memref<2x512xf32, #tpu.memory_space<vmem>>, vector<1x256xf32>
    %119 = vector.broadcast %117 : f32 to vector<1x256xf32>
    %120 = arith.mulf %119, %118 : vector<1x256xf32>
    %121 = arith.addf %116, %120 : vector<1x256xf32>
    %c77_46 = arith.constant 77 : index
    %122 = memref.load %arg4[%c77_46] : memref<98xf32, #tpu.memory_space<smem>>
    %c1_47 = arith.constant 1 : index
    %c141_48 = arith.constant 141 : index
    %123 = vector.load %arg6[%c1_47, %c141_48] : memref<2x512xf32, #tpu.memory_space<vmem>>, vector<1x256xf32>
    %124 = vector.broadcast %122 : f32 to vector<1x256xf32>
    %125 = arith.mulf %124, %123 : vector<1x256xf32>
    %126 = arith.addf %121, %125 : vector<1x256xf32>
    %c84 = arith.constant 84 : index
    %127 = memref.load %arg4[%c84] : memref<98xf32, #tpu.memory_space<smem>>
    %c1_49 = arith.constant 1 : index
    %c157_50 = arith.constant 157 : index
    %128 = vector.load %arg6[%c1_49, %c157_50] : memref<2x512xf32, #tpu.memory_space<vmem>>, vector<1x256xf32>
    %129 = vector.broadcast %127 : f32 to vector<1x256xf32>
    %130 = arith.mulf %129, %128 : vector<1x256xf32>
    %131 = arith.addf %126, %130 : vector<1x256xf32>
    %c91 = arith.constant 91 : index
    %132 = memref.load %arg4[%c91] : memref<98xf32, #tpu.memory_space<smem>>
    %c1_51 = arith.constant 1 : index
    %c173_52 = arith.constant 173 : index
    %133 = vector.load %arg6[%c1_51, %c173_52] : memref<2x512xf32, #tpu.memory_space<vmem>>, vector<1x256xf32>
    %134 = vector.broadcast %132 : f32 to vector<1x256xf32>
    %135 = arith.mulf %134, %133 : vector<1x256xf32>
    %136 = arith.addf %131, %135 : vector<1x256xf32>
    %137 = arith.mulf %65, %136 : vector<1x256xf32>
    %138 = arith.addf %54, %137 : vector<1x256xf32>
    %c-2_i32 = arith.constant -2 : i32
    %139 = vector.broadcast %c-2_i32 : i32 to vector<1x256xi32>
    %140 = arith.addi %53, %139 : vector<1x256xi32>
    %c0_i32_53 = arith.constant 0 : i32
    %141 = vector.broadcast %c0_i32_53 : i32 to vector<1x256xi32>
    %142 = arith.cmpi sge, %140, %141 : vector<1x256xi32>
    %c-2_i32_54 = arith.constant -2 : i32
    %143 = vector.broadcast %c-2_i32_54 : i32 to vector<1x256xi32>
    %144 = arith.addi %53, %143 : vector<1x256xi32>
    %c16_i32_55 = arith.constant 16 : i32
    %145 = vector.broadcast %c16_i32_55 : i32 to vector<1x256xi32>
    %146 = arith.cmpi slt, %144, %145 : vector<1x256xi32>
    %147 = arith.andi %142, %146 : vector<1x256xi1>
    %148 = arith.extui %147 : vector<1x256xi1> to vector<1x256xi32>
    %149 = arith.sitofp %148 : vector<1x256xi32> to vector<1x256xf32>
    %cst_56 = arith.constant 0.000000e+00 : f32
    %150 = vector.broadcast %cst_56 : f32 to vector<1x256xf32>
    %c1_57 = arith.constant 1 : index
    %151 = memref.load %arg4[%c1_57] : memref<98xf32, #tpu.memory_space<smem>>
    %c0_58 = arith.constant 0 : index
    %c78 = arith.constant 78 : index
    %152 = vector.load %arg6[%c0_58, %c78] : memref<2x512xf32, #tpu.memory_space<vmem>>, vector<1x256xf32>
    %153 = vector.broadcast %151 : f32 to vector<1x256xf32>
    %154 = arith.mulf %153, %152 : vector<1x256xf32>
    %155 = arith.addf %150, %154 : vector<1x256xf32>
    %c8 = arith.constant 8 : index
    %156 = memref.load %arg4[%c8] : memref<98xf32, #tpu.memory_space<smem>>
    %c0_59 = arith.constant 0 : index
    %c94 = arith.constant 94 : index
    %157 = vector.load %arg6[%c0_59, %c94] : memref<2x512xf32, #tpu.memory_space<vmem>>, vector<1x256xf32>
    %158 = vector.broadcast %156 : f32 to vector<1x256xf32>
    %159 = arith.mulf %158, %157 : vector<1x256xf32>
    %160 = arith.addf %155, %159 : vector<1x256xf32>
    %c15 = arith.constant 15 : index
    %161 = memref.load %arg4[%c15] : memref<98xf32, #tpu.memory_space<smem>>
    %c0_60 = arith.constant 0 : index
    %c110 = arith.constant 110 : index
    %162 = vector.load %arg6[%c0_60, %c110] : memref<2x512xf32, #tpu.memory_space<vmem>>, vector<1x256xf32>
    %163 = vector.broadcast %161 : f32 to vector<1x256xf32>
    %164 = arith.mulf %163, %162 : vector<1x256xf32>
    %165 = arith.addf %160, %164 : vector<1x256xf32>
    %c22 = arith.constant 22 : index
    %166 = memref.load %arg4[%c22] : memref<98xf32, #tpu.memory_space<smem>>
    %c0_61 = arith.constant 0 : index
    %c126 = arith.constant 126 : index
    %167 = vector.load %arg6[%c0_61, %c126] : memref<2x512xf32, #tpu.memory_space<vmem>>, vector<1x256xf32>
    %168 = vector.broadcast %166 : f32 to vector<1x256xf32>
    %169 = arith.mulf %168, %167 : vector<1x256xf32>
    %170 = arith.addf %165, %169 : vector<1x256xf32>
    %c29 = arith.constant 29 : index
    %171 = memref.load %arg4[%c29] : memref<98xf32, #tpu.memory_space<smem>>
    %c0_62 = arith.constant 0 : index
    %c142 = arith.constant 142 : index
    %172 = vector.load %arg6[%c0_62, %c142] : memref<2x512xf32, #tpu.memory_space<vmem>>, vector<1x256xf32>
    %173 = vector.broadcast %171 : f32 to vector<1x256xf32>
    %174 = arith.mulf %173, %172 : vector<1x256xf32>
    %175 = arith.addf %170, %174 : vector<1x256xf32>
    %c36 = arith.constant 36 : index
    %176 = memref.load %arg4[%c36] : memref<98xf32, #tpu.memory_space<smem>>
    %c0_63 = arith.constant 0 : index
    %c158 = arith.constant 158 : index
    %177 = vector.load %arg6[%c0_63, %c158] : memref<2x512xf32, #tpu.memory_space<vmem>>, vector<1x256xf32>
    %178 = vector.broadcast %176 : f32 to vector<1x256xf32>
    %179 = arith.mulf %178, %177 : vector<1x256xf32>
    %180 = arith.addf %175, %179 : vector<1x256xf32>
    %c43 = arith.constant 43 : index
    %181 = memref.load %arg4[%c43] : memref<98xf32, #tpu.memory_space<smem>>
    %c0_64 = arith.constant 0 : index
    %c174 = arith.constant 174 : index
    %182 = vector.load %arg6[%c0_64, %c174] : memref<2x512xf32, #tpu.memory_space<vmem>>, vector<1x256xf32>
    %183 = vector.broadcast %181 : f32 to vector<1x256xf32>
    %184 = arith.mulf %183, %182 : vector<1x256xf32>
    %185 = arith.addf %180, %184 : vector<1x256xf32>
    %c50 = arith.constant 50 : index
    %186 = memref.load %arg4[%c50] : memref<98xf32, #tpu.memory_space<smem>>
    %c1_65 = arith.constant 1 : index
    %c78_66 = arith.constant 78 : index
    %187 = vector.load %arg6[%c1_65, %c78_66] : memref<2x512xf32, #tpu.memory_space<vmem>>, vector<1x256xf32>
    %188 = vector.broadcast %186 : f32 to vector<1x256xf32>
    %189 = arith.mulf %188, %187 : vector<1x256xf32>
    %190 = arith.addf %185, %189 : vector<1x256xf32>
    %c57 = arith.constant 57 : index
    %191 = memref.load %arg4[%c57] : memref<98xf32, #tpu.memory_space<smem>>
    %c1_67 = arith.constant 1 : index
    %c94_68 = arith.constant 94 : index
    %192 = vector.load %arg6[%c1_67, %c94_68] : memref<2x512xf32, #tpu.memory_space<vmem>>, vector<1x256xf32>
    %193 = vector.broadcast %191 : f32 to vector<1x256xf32>
    %194 = arith.mulf %193, %192 : vector<1x256xf32>
    %195 = arith.addf %190, %194 : vector<1x256xf32>
    %c64 = arith.constant 64 : index
    %196 = memref.load %arg4[%c64] : memref<98xf32, #tpu.memory_space<smem>>
    %c1_69 = arith.constant 1 : index
    %c110_70 = arith.constant 110 : index
    %197 = vector.load %arg6[%c1_69, %c110_70] : memref<2x512xf32, #tpu.memory_space<vmem>>, vector<1x256xf32>
    %198 = vector.broadcast %196 : f32 to vector<1x256xf32>
    %199 = arith.mulf %198, %197 : vector<1x256xf32>
    %200 = arith.addf %195, %199 : vector<1x256xf32>
    %c71 = arith.constant 71 : index
    %201 = memref.load %arg4[%c71] : memref<98xf32, #tpu.memory_space<smem>>
    %c1_71 = arith.constant 1 : index
    %c126_72 = arith.constant 126 : index
    %202 = vector.load %arg6[%c1_71, %c126_72] : memref<2x512xf32, #tpu.memory_space<vmem>>, vector<1x256xf32>
    %203 = vector.broadcast %201 : f32 to vector<1x256xf32>
    %204 = arith.mulf %203, %202 : vector<1x256xf32>
    %205 = arith.addf %200, %204 : vector<1x256xf32>
    %c78_73 = arith.constant 78 : index
    %206 = memref.load %arg4[%c78_73] : memref<98xf32, #tpu.memory_space<smem>>
    %c1_74 = arith.constant 1 : index
    %c142_75 = arith.constant 142 : index
    %207 = vector.load %arg6[%c1_74, %c142_75] : memref<2x512xf32, #tpu.memory_space<vmem>>, vector<1x256xf32>
    %208 = vector.broadcast %206 : f32 to vector<1x256xf32>
    %209 = arith.mulf %208, %207 : vector<1x256xf32>
    %210 = arith.addf %205, %209 : vector<1x256xf32>
    %c85 = arith.constant 85 : index
    %211 = memref.load %arg4[%c85] : memref<98xf32, #tpu.memory_space<smem>>
    %c1_76 = arith.constant 1 : index
    %c158_77 = arith.constant 158 : index
    %212 = vector.load %arg6[%c1_76, %c158_77] : memref<2x512xf32, #tpu.memory_space<vmem>>, vector<1x256xf32>
    %213 = vector.broadcast %211 : f32 to vector<1x256xf32>
    %214 = arith.mulf %213, %212 : vector<1x256xf32>
    %215 = arith.addf %210, %214 : vector<1x256xf32>
    %c92 = arith.constant 92 : index
    %216 = memref.load %arg4[%c92] : memref<98xf32, #tpu.memory_space<smem>>
    %c1_78 = arith.constant 1 : index
    %c174_79 = arith.constant 174 : index
    %217 = vector.load %arg6[%c1_78, %c174_79] : memref<2x512xf32, #tpu.memory_space<vmem>>, vector<1x256xf32>
    %218 = vector.broadcast %216 : f32 to vector<1x256xf32>
    %219 = arith.mulf %218, %217 : vector<1x256xf32>
    %220 = arith.addf %215, %219 : vector<1x256xf32>
    %221 = arith.mulf %149, %220 : vector<1x256xf32>
    %222 = arith.addf %138, %221 : vector<1x256xf32>
    %c-1_i32 = arith.constant -1 : i32
    %223 = vector.broadcast %c-1_i32 : i32 to vector<1x256xi32>
    %224 = arith.addi %53, %223 : vector<1x256xi32>
    %c0_i32_80 = arith.constant 0 : i32
    %225 = vector.broadcast %c0_i32_80 : i32 to vector<1x256xi32>
    %226 = arith.cmpi sge, %224, %225 : vector<1x256xi32>
    %c-1_i32_81 = arith.constant -1 : i32
    %227 = vector.broadcast %c-1_i32_81 : i32 to vector<1x256xi32>
    %228 = arith.addi %53, %227 : vector<1x256xi32>
    %c16_i32_82 = arith.constant 16 : i32
    %229 = vector.broadcast %c16_i32_82 : i32 to vector<1x256xi32>
    %230 = arith.cmpi slt, %228, %229 : vector<1x256xi32>
    %231 = arith.andi %226, %230 : vector<1x256xi1>
    %232 = arith.extui %231 : vector<1x256xi1> to vector<1x256xi32>
    %233 = arith.sitofp %232 : vector<1x256xi32> to vector<1x256xf32>
    %cst_83 = arith.constant 0.000000e+00 : f32
    %234 = vector.broadcast %cst_83 : f32 to vector<1x256xf32>
    %c2 = arith.constant 2 : index
    %235 = memref.load %arg4[%c2] : memref<98xf32, #tpu.memory_space<smem>>
    %c0_84 = arith.constant 0 : index
    %c79 = arith.constant 79 : index
    %236 = vector.load %arg6[%c0_84, %c79] : memref<2x512xf32, #tpu.memory_space<vmem>>, vector<1x256xf32>
    %237 = vector.broadcast %235 : f32 to vector<1x256xf32>
    %238 = arith.mulf %237, %236 : vector<1x256xf32>
    %239 = arith.addf %234, %238 : vector<1x256xf32>
    %c9 = arith.constant 9 : index
    %240 = memref.load %arg4[%c9] : memref<98xf32, #tpu.memory_space<smem>>
    %c0_85 = arith.constant 0 : index
    %c95 = arith.constant 95 : index
    %241 = vector.load %arg6[%c0_85, %c95] : memref<2x512xf32, #tpu.memory_space<vmem>>, vector<1x256xf32>
    %242 = vector.broadcast %240 : f32 to vector<1x256xf32>
    %243 = arith.mulf %242, %241 : vector<1x256xf32>
    %244 = arith.addf %239, %243 : vector<1x256xf32>
    %c16 = arith.constant 16 : index
    %245 = memref.load %arg4[%c16] : memref<98xf32, #tpu.memory_space<smem>>
    %c0_86 = arith.constant 0 : index
    %c111 = arith.constant 111 : index
    %246 = vector.load %arg6[%c0_86, %c111] : memref<2x512xf32, #tpu.memory_space<vmem>>, vector<1x256xf32>
    %247 = vector.broadcast %245 : f32 to vector<1x256xf32>
    %248 = arith.mulf %247, %246 : vector<1x256xf32>
    %249 = arith.addf %244, %248 : vector<1x256xf32>
    %c23 = arith.constant 23 : index
    %250 = memref.load %arg4[%c23] : memref<98xf32, #tpu.memory_space<smem>>
    %c0_87 = arith.constant 0 : index
    %c127 = arith.constant 127 : index
    %251 = vector.load %arg6[%c0_87, %c127] : memref<2x512xf32, #tpu.memory_space<vmem>>, vector<1x256xf32>
    %252 = vector.broadcast %250 : f32 to vector<1x256xf32>
    %253 = arith.mulf %252, %251 : vector<1x256xf32>
    %254 = arith.addf %249, %253 : vector<1x256xf32>
    %c30 = arith.constant 30 : index
    %255 = memref.load %arg4[%c30] : memref<98xf32, #tpu.memory_space<smem>>
    %c0_88 = arith.constant 0 : index
    %c143 = arith.constant 143 : index
    %256 = vector.load %arg6[%c0_88, %c143] : memref<2x512xf32, #tpu.memory_space<vmem>>, vector<1x256xf32>
    %257 = vector.broadcast %255 : f32 to vector<1x256xf32>
    %258 = arith.mulf %257, %256 : vector<1x256xf32>
    %259 = arith.addf %254, %258 : vector<1x256xf32>
    %c37 = arith.constant 37 : index
    %260 = memref.load %arg4[%c37] : memref<98xf32, #tpu.memory_space<smem>>
    %c0_89 = arith.constant 0 : index
    %c159 = arith.constant 159 : index
    %261 = vector.load %arg6[%c0_89, %c159] : memref<2x512xf32, #tpu.memory_space<vmem>>, vector<1x256xf32>
    %262 = vector.broadcast %260 : f32 to vector<1x256xf32>
    %263 = arith.mulf %262, %261 : vector<1x256xf32>
    %264 = arith.addf %259, %263 : vector<1x256xf32>
    %c44 = arith.constant 44 : index
    %265 = memref.load %arg4[%c44] : memref<98xf32, #tpu.memory_space<smem>>
    %c0_90 = arith.constant 0 : index
    %c175 = arith.constant 175 : index
    %266 = vector.load %arg6[%c0_90, %c175] : memref<2x512xf32, #tpu.memory_space<vmem>>, vector<1x256xf32>
    %267 = vector.broadcast %265 : f32 to vector<1x256xf32>
    %268 = arith.mulf %267, %266 : vector<1x256xf32>
    %269 = arith.addf %264, %268 : vector<1x256xf32>
    %c51 = arith.constant 51 : index
    %270 = memref.load %arg4[%c51] : memref<98xf32, #tpu.memory_space<smem>>
    %c1_91 = arith.constant 1 : index
    %c79_92 = arith.constant 79 : index
    %271 = vector.load %arg6[%c1_91, %c79_92] : memref<2x512xf32, #tpu.memory_space<vmem>>, vector<1x256xf32>
    %272 = vector.broadcast %270 : f32 to vector<1x256xf32>
    %273 = arith.mulf %272, %271 : vector<1x256xf32>
    %274 = arith.addf %269, %273 : vector<1x256xf32>
    %c58 = arith.constant 58 : index
    %275 = memref.load %arg4[%c58] : memref<98xf32, #tpu.memory_space<smem>>
    %c1_93 = arith.constant 1 : index
    %c95_94 = arith.constant 95 : index
    %276 = vector.load %arg6[%c1_93, %c95_94] : memref<2x512xf32, #tpu.memory_space<vmem>>, vector<1x256xf32>
    %277 = vector.broadcast %275 : f32 to vector<1x256xf32>
    %278 = arith.mulf %277, %276 : vector<1x256xf32>
    %279 = arith.addf %274, %278 : vector<1x256xf32>
    %c65 = arith.constant 65 : index
    %280 = memref.load %arg4[%c65] : memref<98xf32, #tpu.memory_space<smem>>
    %c1_95 = arith.constant 1 : index
    %c111_96 = arith.constant 111 : index
    %281 = vector.load %arg6[%c1_95, %c111_96] : memref<2x512xf32, #tpu.memory_space<vmem>>, vector<1x256xf32>
    %282 = vector.broadcast %280 : f32 to vector<1x256xf32>
    %283 = arith.mulf %282, %281 : vector<1x256xf32>
    %284 = arith.addf %279, %283 : vector<1x256xf32>
    %c72 = arith.constant 72 : index
    %285 = memref.load %arg4[%c72] : memref<98xf32, #tpu.memory_space<smem>>
    %c1_97 = arith.constant 1 : index
    %c127_98 = arith.constant 127 : index
    %286 = vector.load %arg6[%c1_97, %c127_98] : memref<2x512xf32, #tpu.memory_space<vmem>>, vector<1x256xf32>
    %287 = vector.broadcast %285 : f32 to vector<1x256xf32>
    %288 = arith.mulf %287, %286 : vector<1x256xf32>
    %289 = arith.addf %284, %288 : vector<1x256xf32>
    %c79_99 = arith.constant 79 : index
    %290 = memref.load %arg4[%c79_99] : memref<98xf32, #tpu.memory_space<smem>>
    %c1_100 = arith.constant 1 : index
    %c143_101 = arith.constant 143 : index
    %291 = vector.load %arg6[%c1_100, %c143_101] : memref<2x512xf32, #tpu.memory_space<vmem>>, vector<1x256xf32>
    %292 = vector.broadcast %290 : f32 to vector<1x256xf32>
    %293 = arith.mulf %292, %291 : vector<1x256xf32>
    %294 = arith.addf %289, %293 : vector<1x256xf32>
    %c86 = arith.constant 86 : index
    %295 = memref.load %arg4[%c86] : memref<98xf32, #tpu.memory_space<smem>>
    %c1_102 = arith.constant 1 : index
    %c159_103 = arith.constant 159 : index
    %296 = vector.load %arg6[%c1_102, %c159_103] : memref<2x512xf32, #tpu.memory_space<vmem>>, vector<1x256xf32>
    %297 = vector.broadcast %295 : f32 to vector<1x256xf32>
    %298 = arith.mulf %297, %296 : vector<1x256xf32>
    %299 = arith.addf %294, %298 : vector<1x256xf32>
    %c93_104 = arith.constant 93 : index
    %300 = memref.load %arg4[%c93_104] : memref<98xf32, #tpu.memory_space<smem>>
    %c1_105 = arith.constant 1 : index
    %c175_106 = arith.constant 175 : index
    %301 = vector.load %arg6[%c1_105, %c175_106] : memref<2x512xf32, #tpu.memory_space<vmem>>, vector<1x256xf32>
    %302 = vector.broadcast %300 : f32 to vector<1x256xf32>
    %303 = arith.mulf %302, %301 : vector<1x256xf32>
    %304 = arith.addf %299, %303 : vector<1x256xf32>
    %305 = arith.mulf %233, %304 : vector<1x256xf32>
    %306 = arith.addf %222, %305 : vector<1x256xf32>
    %c0_i32_107 = arith.constant 0 : i32
    %307 = vector.broadcast %c0_i32_107 : i32 to vector<1x256xi32>
    %308 = arith.addi %53, %307 : vector<1x256xi32>
    %c0_i32_108 = arith.constant 0 : i32
    %309 = vector.broadcast %c0_i32_108 : i32 to vector<1x256xi32>
    %310 = arith.cmpi sge, %308, %309 : vector<1x256xi32>
    %c0_i32_109 = arith.constant 0 : i32
    %311 = vector.broadcast %c0_i32_109 : i32 to vector<1x256xi32>
    %312 = arith.addi %53, %311 : vector<1x256xi32>
    %c16_i32_110 = arith.constant 16 : i32
    %313 = vector.broadcast %c16_i32_110 : i32 to vector<1x256xi32>
    %314 = arith.cmpi slt, %312, %313 : vector<1x256xi32>
    %315 = arith.andi %310, %314 : vector<1x256xi1>
    %316 = arith.extui %315 : vector<1x256xi1> to vector<1x256xi32>
    %317 = arith.sitofp %316 : vector<1x256xi32> to vector<1x256xf32>
    %cst_111 = arith.constant 0.000000e+00 : f32
    %318 = vector.broadcast %cst_111 : f32 to vector<1x256xf32>
    %c3 = arith.constant 3 : index
    %319 = memref.load %arg4[%c3] : memref<98xf32, #tpu.memory_space<smem>>
    %c0_112 = arith.constant 0 : index
    %c80 = arith.constant 80 : index
    %320 = vector.load %arg6[%c0_112, %c80] : memref<2x512xf32, #tpu.memory_space<vmem>>, vector<1x256xf32>
    %321 = vector.broadcast %319 : f32 to vector<1x256xf32>
    %322 = arith.mulf %321, %320 : vector<1x256xf32>
    %323 = arith.addf %318, %322 : vector<1x256xf32>
    %c10 = arith.constant 10 : index
    %324 = memref.load %arg4[%c10] : memref<98xf32, #tpu.memory_space<smem>>
    %c0_113 = arith.constant 0 : index
    %c96 = arith.constant 96 : index
    %325 = vector.load %arg6[%c0_113, %c96] : memref<2x512xf32, #tpu.memory_space<vmem>>, vector<1x256xf32>
    %326 = vector.broadcast %324 : f32 to vector<1x256xf32>
    %327 = arith.mulf %326, %325 : vector<1x256xf32>
    %328 = arith.addf %323, %327 : vector<1x256xf32>
    %c17 = arith.constant 17 : index
    %329 = memref.load %arg4[%c17] : memref<98xf32, #tpu.memory_space<smem>>
    %c0_114 = arith.constant 0 : index
    %c112 = arith.constant 112 : index
    %330 = vector.load %arg6[%c0_114, %c112] : memref<2x512xf32, #tpu.memory_space<vmem>>, vector<1x256xf32>
    %331 = vector.broadcast %329 : f32 to vector<1x256xf32>
    %332 = arith.mulf %331, %330 : vector<1x256xf32>
    %333 = arith.addf %328, %332 : vector<1x256xf32>
    %c24 = arith.constant 24 : index
    %334 = memref.load %arg4[%c24] : memref<98xf32, #tpu.memory_space<smem>>
    %c0_115 = arith.constant 0 : index
    %c128_116 = arith.constant 128 : index
    %335 = vector.load %arg6[%c0_115, %c128_116] : memref<2x512xf32, #tpu.memory_space<vmem>>, vector<1x256xf32>
    %336 = vector.broadcast %334 : f32 to vector<1x256xf32>
    %337 = arith.mulf %336, %335 : vector<1x256xf32>
    %338 = arith.addf %333, %337 : vector<1x256xf32>
    %c31 = arith.constant 31 : index
    %339 = memref.load %arg4[%c31] : memref<98xf32, #tpu.memory_space<smem>>
    %c0_117 = arith.constant 0 : index
    %c144 = arith.constant 144 : index
    %340 = vector.load %arg6[%c0_117, %c144] : memref<2x512xf32, #tpu.memory_space<vmem>>, vector<1x256xf32>
    %341 = vector.broadcast %339 : f32 to vector<1x256xf32>
    %342 = arith.mulf %341, %340 : vector<1x256xf32>
    %343 = arith.addf %338, %342 : vector<1x256xf32>
    %c38 = arith.constant 38 : index
    %344 = memref.load %arg4[%c38] : memref<98xf32, #tpu.memory_space<smem>>
    %c0_118 = arith.constant 0 : index
    %c160 = arith.constant 160 : index
    %345 = vector.load %arg6[%c0_118, %c160] : memref<2x512xf32, #tpu.memory_space<vmem>>, vector<1x256xf32>
    %346 = vector.broadcast %344 : f32 to vector<1x256xf32>
    %347 = arith.mulf %346, %345 : vector<1x256xf32>
    %348 = arith.addf %343, %347 : vector<1x256xf32>
    %c45 = arith.constant 45 : index
    %349 = memref.load %arg4[%c45] : memref<98xf32, #tpu.memory_space<smem>>
    %c0_119 = arith.constant 0 : index
    %c176 = arith.constant 176 : index
    %350 = vector.load %arg6[%c0_119, %c176] : memref<2x512xf32, #tpu.memory_space<vmem>>, vector<1x256xf32>
    %351 = vector.broadcast %349 : f32 to vector<1x256xf32>
    %352 = arith.mulf %351, %350 : vector<1x256xf32>
    %353 = arith.addf %348, %352 : vector<1x256xf32>
    %c52 = arith.constant 52 : index
    %354 = memref.load %arg4[%c52] : memref<98xf32, #tpu.memory_space<smem>>
    %c1_120 = arith.constant 1 : index
    %c80_121 = arith.constant 80 : index
    %355 = vector.load %arg6[%c1_120, %c80_121] : memref<2x512xf32, #tpu.memory_space<vmem>>, vector<1x256xf32>
    %356 = vector.broadcast %354 : f32 to vector<1x256xf32>
    %357 = arith.mulf %356, %355 : vector<1x256xf32>
    %358 = arith.addf %353, %357 : vector<1x256xf32>
    %c59 = arith.constant 59 : index
    %359 = memref.load %arg4[%c59] : memref<98xf32, #tpu.memory_space<smem>>
    %c1_122 = arith.constant 1 : index
    %c96_123 = arith.constant 96 : index
    %360 = vector.load %arg6[%c1_122, %c96_123] : memref<2x512xf32, #tpu.memory_space<vmem>>, vector<1x256xf32>
    %361 = vector.broadcast %359 : f32 to vector<1x256xf32>
    %362 = arith.mulf %361, %360 : vector<1x256xf32>
    %363 = arith.addf %358, %362 : vector<1x256xf32>
    %c66 = arith.constant 66 : index
    %364 = memref.load %arg4[%c66] : memref<98xf32, #tpu.memory_space<smem>>
    %c1_124 = arith.constant 1 : index
    %c112_125 = arith.constant 112 : index
    %365 = vector.load %arg6[%c1_124, %c112_125] : memref<2x512xf32, #tpu.memory_space<vmem>>, vector<1x256xf32>
    %366 = vector.broadcast %364 : f32 to vector<1x256xf32>
    %367 = arith.mulf %366, %365 : vector<1x256xf32>
    %368 = arith.addf %363, %367 : vector<1x256xf32>
    %c73 = arith.constant 73 : index
    %369 = memref.load %arg4[%c73] : memref<98xf32, #tpu.memory_space<smem>>
    %c1_126 = arith.constant 1 : index
    %c128_127 = arith.constant 128 : index
    %370 = vector.load %arg6[%c1_126, %c128_127] : memref<2x512xf32, #tpu.memory_space<vmem>>, vector<1x256xf32>
    %371 = vector.broadcast %369 : f32 to vector<1x256xf32>
    %372 = arith.mulf %371, %370 : vector<1x256xf32>
    %373 = arith.addf %368, %372 : vector<1x256xf32>
    %c80_128 = arith.constant 80 : index
    %374 = memref.load %arg4[%c80_128] : memref<98xf32, #tpu.memory_space<smem>>
    %c1_129 = arith.constant 1 : index
    %c144_130 = arith.constant 144 : index
    %375 = vector.load %arg6[%c1_129, %c144_130] : memref<2x512xf32, #tpu.memory_space<vmem>>, vector<1x256xf32>
    %376 = vector.broadcast %374 : f32 to vector<1x256xf32>
    %377 = arith.mulf %376, %375 : vector<1x256xf32>
    %378 = arith.addf %373, %377 : vector<1x256xf32>
    %c87 = arith.constant 87 : index
    %379 = memref.load %arg4[%c87] : memref<98xf32, #tpu.memory_space<smem>>
    %c1_131 = arith.constant 1 : index
    %c160_132 = arith.constant 160 : index
    %380 = vector.load %arg6[%c1_131, %c160_132] : memref<2x512xf32, #tpu.memory_space<vmem>>, vector<1x256xf32>
    %381 = vector.broadcast %379 : f32 to vector<1x256xf32>
    %382 = arith.mulf %381, %380 : vector<1x256xf32>
    %383 = arith.addf %378, %382 : vector<1x256xf32>
    %c94_133 = arith.constant 94 : index
    %384 = memref.load %arg4[%c94_133] : memref<98xf32, #tpu.memory_space<smem>>
    %c1_134 = arith.constant 1 : index
    %c176_135 = arith.constant 176 : index
    %385 = vector.load %arg6[%c1_134, %c176_135] : memref<2x512xf32, #tpu.memory_space<vmem>>, vector<1x256xf32>
    %386 = vector.broadcast %384 : f32 to vector<1x256xf32>
    %387 = arith.mulf %386, %385 : vector<1x256xf32>
    %388 = arith.addf %383, %387 : vector<1x256xf32>
    %389 = arith.mulf %317, %388 : vector<1x256xf32>
    %390 = arith.addf %306, %389 : vector<1x256xf32>
    %c1_i32_136 = arith.constant 1 : i32
    %391 = vector.broadcast %c1_i32_136 : i32 to vector<1x256xi32>
    %392 = arith.addi %53, %391 : vector<1x256xi32>
    %c0_i32_137 = arith.constant 0 : i32
    %393 = vector.broadcast %c0_i32_137 : i32 to vector<1x256xi32>
    %394 = arith.cmpi sge, %392, %393 : vector<1x256xi32>
    %c1_i32_138 = arith.constant 1 : i32
    %395 = vector.broadcast %c1_i32_138 : i32 to vector<1x256xi32>
    %396 = arith.addi %53, %395 : vector<1x256xi32>
    %c16_i32_139 = arith.constant 16 : i32
    %397 = vector.broadcast %c16_i32_139 : i32 to vector<1x256xi32>
    %398 = arith.cmpi slt, %396, %397 : vector<1x256xi32>
    %399 = arith.andi %394, %398 : vector<1x256xi1>
    %400 = arith.extui %399 : vector<1x256xi1> to vector<1x256xi32>
    %401 = arith.sitofp %400 : vector<1x256xi32> to vector<1x256xf32>
    %cst_140 = arith.constant 0.000000e+00 : f32
    %402 = vector.broadcast %cst_140 : f32 to vector<1x256xf32>
    %c4 = arith.constant 4 : index
    %403 = memref.load %arg4[%c4] : memref<98xf32, #tpu.memory_space<smem>>
    %c0_141 = arith.constant 0 : index
    %c81 = arith.constant 81 : index
    %404 = vector.load %arg6[%c0_141, %c81] : memref<2x512xf32, #tpu.memory_space<vmem>>, vector<1x256xf32>
    %405 = vector.broadcast %403 : f32 to vector<1x256xf32>
    %406 = arith.mulf %405, %404 : vector<1x256xf32>
    %407 = arith.addf %402, %406 : vector<1x256xf32>
    %c11 = arith.constant 11 : index
    %408 = memref.load %arg4[%c11] : memref<98xf32, #tpu.memory_space<smem>>
    %c0_142 = arith.constant 0 : index
    %c97 = arith.constant 97 : index
    %409 = vector.load %arg6[%c0_142, %c97] : memref<2x512xf32, #tpu.memory_space<vmem>>, vector<1x256xf32>
    %410 = vector.broadcast %408 : f32 to vector<1x256xf32>
    %411 = arith.mulf %410, %409 : vector<1x256xf32>
    %412 = arith.addf %407, %411 : vector<1x256xf32>
    %c18 = arith.constant 18 : index
    %413 = memref.load %arg4[%c18] : memref<98xf32, #tpu.memory_space<smem>>
    %c0_143 = arith.constant 0 : index
    %c113 = arith.constant 113 : index
    %414 = vector.load %arg6[%c0_143, %c113] : memref<2x512xf32, #tpu.memory_space<vmem>>, vector<1x256xf32>
    %415 = vector.broadcast %413 : f32 to vector<1x256xf32>
    %416 = arith.mulf %415, %414 : vector<1x256xf32>
    %417 = arith.addf %412, %416 : vector<1x256xf32>
    %c25 = arith.constant 25 : index
    %418 = memref.load %arg4[%c25] : memref<98xf32, #tpu.memory_space<smem>>
    %c0_144 = arith.constant 0 : index
    %c129 = arith.constant 129 : index
    %419 = vector.load %arg6[%c0_144, %c129] : memref<2x512xf32, #tpu.memory_space<vmem>>, vector<1x256xf32>
    %420 = vector.broadcast %418 : f32 to vector<1x256xf32>
    %421 = arith.mulf %420, %419 : vector<1x256xf32>
    %422 = arith.addf %417, %421 : vector<1x256xf32>
    %c32 = arith.constant 32 : index
    %423 = memref.load %arg4[%c32] : memref<98xf32, #tpu.memory_space<smem>>
    %c0_145 = arith.constant 0 : index
    %c145 = arith.constant 145 : index
    %424 = vector.load %arg6[%c0_145, %c145] : memref<2x512xf32, #tpu.memory_space<vmem>>, vector<1x256xf32>
    %425 = vector.broadcast %423 : f32 to vector<1x256xf32>
    %426 = arith.mulf %425, %424 : vector<1x256xf32>
    %427 = arith.addf %422, %426 : vector<1x256xf32>
    %c39 = arith.constant 39 : index
    %428 = memref.load %arg4[%c39] : memref<98xf32, #tpu.memory_space<smem>>
    %c0_146 = arith.constant 0 : index
    %c161 = arith.constant 161 : index
    %429 = vector.load %arg6[%c0_146, %c161] : memref<2x512xf32, #tpu.memory_space<vmem>>, vector<1x256xf32>
    %430 = vector.broadcast %428 : f32 to vector<1x256xf32>
    %431 = arith.mulf %430, %429 : vector<1x256xf32>
    %432 = arith.addf %427, %431 : vector<1x256xf32>
    %c46 = arith.constant 46 : index
    %433 = memref.load %arg4[%c46] : memref<98xf32, #tpu.memory_space<smem>>
    %c0_147 = arith.constant 0 : index
    %c177 = arith.constant 177 : index
    %434 = vector.load %arg6[%c0_147, %c177] : memref<2x512xf32, #tpu.memory_space<vmem>>, vector<1x256xf32>
    %435 = vector.broadcast %433 : f32 to vector<1x256xf32>
    %436 = arith.mulf %435, %434 : vector<1x256xf32>
    %437 = arith.addf %432, %436 : vector<1x256xf32>
    %c53 = arith.constant 53 : index
    %438 = memref.load %arg4[%c53] : memref<98xf32, #tpu.memory_space<smem>>
    %c1_148 = arith.constant 1 : index
    %c81_149 = arith.constant 81 : index
    %439 = vector.load %arg6[%c1_148, %c81_149] : memref<2x512xf32, #tpu.memory_space<vmem>>, vector<1x256xf32>
    %440 = vector.broadcast %438 : f32 to vector<1x256xf32>
    %441 = arith.mulf %440, %439 : vector<1x256xf32>
    %442 = arith.addf %437, %441 : vector<1x256xf32>
    %c60 = arith.constant 60 : index
    %443 = memref.load %arg4[%c60] : memref<98xf32, #tpu.memory_space<smem>>
    %c1_150 = arith.constant 1 : index
    %c97_151 = arith.constant 97 : index
    %444 = vector.load %arg6[%c1_150, %c97_151] : memref<2x512xf32, #tpu.memory_space<vmem>>, vector<1x256xf32>
    %445 = vector.broadcast %443 : f32 to vector<1x256xf32>
    %446 = arith.mulf %445, %444 : vector<1x256xf32>
    %447 = arith.addf %442, %446 : vector<1x256xf32>
    %c67 = arith.constant 67 : index
    %448 = memref.load %arg4[%c67] : memref<98xf32, #tpu.memory_space<smem>>
    %c1_152 = arith.constant 1 : index
    %c113_153 = arith.constant 113 : index
    %449 = vector.load %arg6[%c1_152, %c113_153] : memref<2x512xf32, #tpu.memory_space<vmem>>, vector<1x256xf32>
    %450 = vector.broadcast %448 : f32 to vector<1x256xf32>
    %451 = arith.mulf %450, %449 : vector<1x256xf32>
    %452 = arith.addf %447, %451 : vector<1x256xf32>
    %c74 = arith.constant 74 : index
    %453 = memref.load %arg4[%c74] : memref<98xf32, #tpu.memory_space<smem>>
    %c1_154 = arith.constant 1 : index
    %c129_155 = arith.constant 129 : index
    %454 = vector.load %arg6[%c1_154, %c129_155] : memref<2x512xf32, #tpu.memory_space<vmem>>, vector<1x256xf32>
    %455 = vector.broadcast %453 : f32 to vector<1x256xf32>
    %456 = arith.mulf %455, %454 : vector<1x256xf32>
    %457 = arith.addf %452, %456 : vector<1x256xf32>
    %c81_156 = arith.constant 81 : index
    %458 = memref.load %arg4[%c81_156] : memref<98xf32, #tpu.memory_space<smem>>
    %c1_157 = arith.constant 1 : index
    %c145_158 = arith.constant 145 : index
    %459 = vector.load %arg6[%c1_157, %c145_158] : memref<2x512xf32, #tpu.memory_space<vmem>>, vector<1x256xf32>
    %460 = vector.broadcast %458 : f32 to vector<1x256xf32>
    %461 = arith.mulf %460, %459 : vector<1x256xf32>
    %462 = arith.addf %457, %461 : vector<1x256xf32>
    %c88 = arith.constant 88 : index
    %463 = memref.load %arg4[%c88] : memref<98xf32, #tpu.memory_space<smem>>
    %c1_159 = arith.constant 1 : index
    %c161_160 = arith.constant 161 : index
    %464 = vector.load %arg6[%c1_159, %c161_160] : memref<2x512xf32, #tpu.memory_space<vmem>>, vector<1x256xf32>
    %465 = vector.broadcast %463 : f32 to vector<1x256xf32>
    %466 = arith.mulf %465, %464 : vector<1x256xf32>
    %467 = arith.addf %462, %466 : vector<1x256xf32>
    %c95_161 = arith.constant 95 : index
    %468 = memref.load %arg4[%c95_161] : memref<98xf32, #tpu.memory_space<smem>>
    %c1_162 = arith.constant 1 : index
    %c177_163 = arith.constant 177 : index
    %469 = vector.load %arg6[%c1_162, %c177_163] : memref<2x512xf32, #tpu.memory_space<vmem>>, vector<1x256xf32>
    %470 = vector.broadcast %468 : f32 to vector<1x256xf32>
    %471 = arith.mulf %470, %469 : vector<1x256xf32>
    %472 = arith.addf %467, %471 : vector<1x256xf32>
    %473 = arith.mulf %401, %472 : vector<1x256xf32>
    %474 = arith.addf %390, %473 : vector<1x256xf32>
    %c2_i32 = arith.constant 2 : i32
    %475 = vector.broadcast %c2_i32 : i32 to vector<1x256xi32>
    %476 = arith.addi %53, %475 : vector<1x256xi32>
    %c0_i32_164 = arith.constant 0 : i32
    %477 = vector.broadcast %c0_i32_164 : i32 to vector<1x256xi32>
    %478 = arith.cmpi sge, %476, %477 : vector<1x256xi32>
    %c2_i32_165 = arith.constant 2 : i32
    %479 = vector.broadcast %c2_i32_165 : i32 to vector<1x256xi32>
    %480 = arith.addi %53, %479 : vector<1x256xi32>
    %c16_i32_166 = arith.constant 16 : i32
    %481 = vector.broadcast %c16_i32_166 : i32 to vector<1x256xi32>
    %482 = arith.cmpi slt, %480, %481 : vector<1x256xi32>
    %483 = arith.andi %478, %482 : vector<1x256xi1>
    %484 = arith.extui %483 : vector<1x256xi1> to vector<1x256xi32>
    %485 = arith.sitofp %484 : vector<1x256xi32> to vector<1x256xf32>
    %cst_167 = arith.constant 0.000000e+00 : f32
    %486 = vector.broadcast %cst_167 : f32 to vector<1x256xf32>
    %c5 = arith.constant 5 : index
    %487 = memref.load %arg4[%c5] : memref<98xf32, #tpu.memory_space<smem>>
    %c0_168 = arith.constant 0 : index
    %c82 = arith.constant 82 : index
    %488 = vector.load %arg6[%c0_168, %c82] : memref<2x512xf32, #tpu.memory_space<vmem>>, vector<1x256xf32>
    %489 = vector.broadcast %487 : f32 to vector<1x256xf32>
    %490 = arith.mulf %489, %488 : vector<1x256xf32>
    %491 = arith.addf %486, %490 : vector<1x256xf32>
    %c12 = arith.constant 12 : index
    %492 = memref.load %arg4[%c12] : memref<98xf32, #tpu.memory_space<smem>>
    %c0_169 = arith.constant 0 : index
    %c98 = arith.constant 98 : index
    %493 = vector.load %arg6[%c0_169, %c98] : memref<2x512xf32, #tpu.memory_space<vmem>>, vector<1x256xf32>
    %494 = vector.broadcast %492 : f32 to vector<1x256xf32>
    %495 = arith.mulf %494, %493 : vector<1x256xf32>
    %496 = arith.addf %491, %495 : vector<1x256xf32>
    %c19 = arith.constant 19 : index
    %497 = memref.load %arg4[%c19] : memref<98xf32, #tpu.memory_space<smem>>
    %c0_170 = arith.constant 0 : index
    %c114 = arith.constant 114 : index
    %498 = vector.load %arg6[%c0_170, %c114] : memref<2x512xf32, #tpu.memory_space<vmem>>, vector<1x256xf32>
    %499 = vector.broadcast %497 : f32 to vector<1x256xf32>
    %500 = arith.mulf %499, %498 : vector<1x256xf32>
    %501 = arith.addf %496, %500 : vector<1x256xf32>
    %c26 = arith.constant 26 : index
    %502 = memref.load %arg4[%c26] : memref<98xf32, #tpu.memory_space<smem>>
    %c0_171 = arith.constant 0 : index
    %c130 = arith.constant 130 : index
    %503 = vector.load %arg6[%c0_171, %c130] : memref<2x512xf32, #tpu.memory_space<vmem>>, vector<1x256xf32>
    %504 = vector.broadcast %502 : f32 to vector<1x256xf32>
    %505 = arith.mulf %504, %503 : vector<1x256xf32>
    %506 = arith.addf %501, %505 : vector<1x256xf32>
    %c33 = arith.constant 33 : index
    %507 = memref.load %arg4[%c33] : memref<98xf32, #tpu.memory_space<smem>>
    %c0_172 = arith.constant 0 : index
    %c146 = arith.constant 146 : index
    %508 = vector.load %arg6[%c0_172, %c146] : memref<2x512xf32, #tpu.memory_space<vmem>>, vector<1x256xf32>
    %509 = vector.broadcast %507 : f32 to vector<1x256xf32>
    %510 = arith.mulf %509, %508 : vector<1x256xf32>
    %511 = arith.addf %506, %510 : vector<1x256xf32>
    %c40 = arith.constant 40 : index
    %512 = memref.load %arg4[%c40] : memref<98xf32, #tpu.memory_space<smem>>
    %c0_173 = arith.constant 0 : index
    %c162 = arith.constant 162 : index
    %513 = vector.load %arg6[%c0_173, %c162] : memref<2x512xf32, #tpu.memory_space<vmem>>, vector<1x256xf32>
    %514 = vector.broadcast %512 : f32 to vector<1x256xf32>
    %515 = arith.mulf %514, %513 : vector<1x256xf32>
    %516 = arith.addf %511, %515 : vector<1x256xf32>
    %c47 = arith.constant 47 : index
    %517 = memref.load %arg4[%c47] : memref<98xf32, #tpu.memory_space<smem>>
    %c0_174 = arith.constant 0 : index
    %c178 = arith.constant 178 : index
    %518 = vector.load %arg6[%c0_174, %c178] : memref<2x512xf32, #tpu.memory_space<vmem>>, vector<1x256xf32>
    %519 = vector.broadcast %517 : f32 to vector<1x256xf32>
    %520 = arith.mulf %519, %518 : vector<1x256xf32>
    %521 = arith.addf %516, %520 : vector<1x256xf32>
    %c54 = arith.constant 54 : index
    %522 = memref.load %arg4[%c54] : memref<98xf32, #tpu.memory_space<smem>>
    %c1_175 = arith.constant 1 : index
    %c82_176 = arith.constant 82 : index
    %523 = vector.load %arg6[%c1_175, %c82_176] : memref<2x512xf32, #tpu.memory_space<vmem>>, vector<1x256xf32>
    %524 = vector.broadcast %522 : f32 to vector<1x256xf32>
    %525 = arith.mulf %524, %523 : vector<1x256xf32>
    %526 = arith.addf %521, %525 : vector<1x256xf32>
    %c61 = arith.constant 61 : index
    %527 = memref.load %arg4[%c61] : memref<98xf32, #tpu.memory_space<smem>>
    %c1_177 = arith.constant 1 : index
    %c98_178 = arith.constant 98 : index
    %528 = vector.load %arg6[%c1_177, %c98_178] : memref<2x512xf32, #tpu.memory_space<vmem>>, vector<1x256xf32>
    %529 = vector.broadcast %527 : f32 to vector<1x256xf32>
    %530 = arith.mulf %529, %528 : vector<1x256xf32>
    %531 = arith.addf %526, %530 : vector<1x256xf32>
    %c68 = arith.constant 68 : index
    %532 = memref.load %arg4[%c68] : memref<98xf32, #tpu.memory_space<smem>>
    %c1_179 = arith.constant 1 : index
    %c114_180 = arith.constant 114 : index
    %533 = vector.load %arg6[%c1_179, %c114_180] : memref<2x512xf32, #tpu.memory_space<vmem>>, vector<1x256xf32>
    %534 = vector.broadcast %532 : f32 to vector<1x256xf32>
    %535 = arith.mulf %534, %533 : vector<1x256xf32>
    %536 = arith.addf %531, %535 : vector<1x256xf32>
    %c75 = arith.constant 75 : index
    %537 = memref.load %arg4[%c75] : memref<98xf32, #tpu.memory_space<smem>>
    %c1_181 = arith.constant 1 : index
    %c130_182 = arith.constant 130 : index
    %538 = vector.load %arg6[%c1_181, %c130_182] : memref<2x512xf32, #tpu.memory_space<vmem>>, vector<1x256xf32>
    %539 = vector.broadcast %537 : f32 to vector<1x256xf32>
    %540 = arith.mulf %539, %538 : vector<1x256xf32>
    %541 = arith.addf %536, %540 : vector<1x256xf32>
    %c82_183 = arith.constant 82 : index
    %542 = memref.load %arg4[%c82_183] : memref<98xf32, #tpu.memory_space<smem>>
    %c1_184 = arith.constant 1 : index
    %c146_185 = arith.constant 146 : index
    %543 = vector.load %arg6[%c1_184, %c146_185] : memref<2x512xf32, #tpu.memory_space<vmem>>, vector<1x256xf32>
    %544 = vector.broadcast %542 : f32 to vector<1x256xf32>
    %545 = arith.mulf %544, %543 : vector<1x256xf32>
    %546 = arith.addf %541, %545 : vector<1x256xf32>
    %c89 = arith.constant 89 : index
    %547 = memref.load %arg4[%c89] : memref<98xf32, #tpu.memory_space<smem>>
    %c1_186 = arith.constant 1 : index
    %c162_187 = arith.constant 162 : index
    %548 = vector.load %arg6[%c1_186, %c162_187] : memref<2x512xf32, #tpu.memory_space<vmem>>, vector<1x256xf32>
    %549 = vector.broadcast %547 : f32 to vector<1x256xf32>
    %550 = arith.mulf %549, %548 : vector<1x256xf32>
    %551 = arith.addf %546, %550 : vector<1x256xf32>
    %c96_188 = arith.constant 96 : index
    %552 = memref.load %arg4[%c96_188] : memref<98xf32, #tpu.memory_space<smem>>
    %c1_189 = arith.constant 1 : index
    %c178_190 = arith.constant 178 : index
    %553 = vector.load %arg6[%c1_189, %c178_190] : memref<2x512xf32, #tpu.memory_space<vmem>>, vector<1x256xf32>
    %554 = vector.broadcast %552 : f32 to vector<1x256xf32>
    %555 = arith.mulf %554, %553 : vector<1x256xf32>
    %556 = arith.addf %551, %555 : vector<1x256xf32>
    %557 = arith.mulf %485, %556 : vector<1x256xf32>
    %558 = arith.addf %474, %557 : vector<1x256xf32>
    %c3_i32 = arith.constant 3 : i32
    %559 = vector.broadcast %c3_i32 : i32 to vector<1x256xi32>
    %560 = arith.addi %53, %559 : vector<1x256xi32>
    %c0_i32_191 = arith.constant 0 : i32
    %561 = vector.broadcast %c0_i32_191 : i32 to vector<1x256xi32>
    %562 = arith.cmpi sge, %560, %561 : vector<1x256xi32>
    %c3_i32_192 = arith.constant 3 : i32
    %563 = vector.broadcast %c3_i32_192 : i32 to vector<1x256xi32>
    %564 = arith.addi %53, %563 : vector<1x256xi32>
    %c16_i32_193 = arith.constant 16 : i32
    %565 = vector.broadcast %c16_i32_193 : i32 to vector<1x256xi32>
    %566 = arith.cmpi slt, %564, %565 : vector<1x256xi32>
    %567 = arith.andi %562, %566 : vector<1x256xi1>
    %568 = arith.extui %567 : vector<1x256xi1> to vector<1x256xi32>
    %569 = arith.sitofp %568 : vector<1x256xi32> to vector<1x256xf32>
    %cst_194 = arith.constant 0.000000e+00 : f32
    %570 = vector.broadcast %cst_194 : f32 to vector<1x256xf32>
    %c6 = arith.constant 6 : index
    %571 = memref.load %arg4[%c6] : memref<98xf32, #tpu.memory_space<smem>>
    %c0_195 = arith.constant 0 : index
    %c83 = arith.constant 83 : index
    %572 = vector.load %arg6[%c0_195, %c83] : memref<2x512xf32, #tpu.memory_space<vmem>>, vector<1x256xf32>
    %573 = vector.broadcast %571 : f32 to vector<1x256xf32>
    %574 = arith.mulf %573, %572 : vector<1x256xf32>
    %575 = arith.addf %570, %574 : vector<1x256xf32>
    %c13 = arith.constant 13 : index
    %576 = memref.load %arg4[%c13] : memref<98xf32, #tpu.memory_space<smem>>
    %c0_196 = arith.constant 0 : index
    %c99 = arith.constant 99 : index
    %577 = vector.load %arg6[%c0_196, %c99] : memref<2x512xf32, #tpu.memory_space<vmem>>, vector<1x256xf32>
    %578 = vector.broadcast %576 : f32 to vector<1x256xf32>
    %579 = arith.mulf %578, %577 : vector<1x256xf32>
    %580 = arith.addf %575, %579 : vector<1x256xf32>
    %c20 = arith.constant 20 : index
    %581 = memref.load %arg4[%c20] : memref<98xf32, #tpu.memory_space<smem>>
    %c0_197 = arith.constant 0 : index
    %c115 = arith.constant 115 : index
    %582 = vector.load %arg6[%c0_197, %c115] : memref<2x512xf32, #tpu.memory_space<vmem>>, vector<1x256xf32>
    %583 = vector.broadcast %581 : f32 to vector<1x256xf32>
    %584 = arith.mulf %583, %582 : vector<1x256xf32>
    %585 = arith.addf %580, %584 : vector<1x256xf32>
    %c27 = arith.constant 27 : index
    %586 = memref.load %arg4[%c27] : memref<98xf32, #tpu.memory_space<smem>>
    %c0_198 = arith.constant 0 : index
    %c131 = arith.constant 131 : index
    %587 = vector.load %arg6[%c0_198, %c131] : memref<2x512xf32, #tpu.memory_space<vmem>>, vector<1x256xf32>
    %588 = vector.broadcast %586 : f32 to vector<1x256xf32>
    %589 = arith.mulf %588, %587 : vector<1x256xf32>
    %590 = arith.addf %585, %589 : vector<1x256xf32>
    %c34 = arith.constant 34 : index
    %591 = memref.load %arg4[%c34] : memref<98xf32, #tpu.memory_space<smem>>
    %c0_199 = arith.constant 0 : index
    %c147 = arith.constant 147 : index
    %592 = vector.load %arg6[%c0_199, %c147] : memref<2x512xf32, #tpu.memory_space<vmem>>, vector<1x256xf32>
    %593 = vector.broadcast %591 : f32 to vector<1x256xf32>
    %594 = arith.mulf %593, %592 : vector<1x256xf32>
    %595 = arith.addf %590, %594 : vector<1x256xf32>
    %c41 = arith.constant 41 : index
    %596 = memref.load %arg4[%c41] : memref<98xf32, #tpu.memory_space<smem>>
    %c0_200 = arith.constant 0 : index
    %c163 = arith.constant 163 : index
    %597 = vector.load %arg6[%c0_200, %c163] : memref<2x512xf32, #tpu.memory_space<vmem>>, vector<1x256xf32>
    %598 = vector.broadcast %596 : f32 to vector<1x256xf32>
    %599 = arith.mulf %598, %597 : vector<1x256xf32>
    %600 = arith.addf %595, %599 : vector<1x256xf32>
    %c48 = arith.constant 48 : index
    %601 = memref.load %arg4[%c48] : memref<98xf32, #tpu.memory_space<smem>>
    %c0_201 = arith.constant 0 : index
    %c179 = arith.constant 179 : index
    %602 = vector.load %arg6[%c0_201, %c179] : memref<2x512xf32, #tpu.memory_space<vmem>>, vector<1x256xf32>
    %603 = vector.broadcast %601 : f32 to vector<1x256xf32>
    %604 = arith.mulf %603, %602 : vector<1x256xf32>
    %605 = arith.addf %600, %604 : vector<1x256xf32>
    %c55 = arith.constant 55 : index
    %606 = memref.load %arg4[%c55] : memref<98xf32, #tpu.memory_space<smem>>
    %c1_202 = arith.constant 1 : index
    %c83_203 = arith.constant 83 : index
    %607 = vector.load %arg6[%c1_202, %c83_203] : memref<2x512xf32, #tpu.memory_space<vmem>>, vector<1x256xf32>
    %608 = vector.broadcast %606 : f32 to vector<1x256xf32>
    %609 = arith.mulf %608, %607 : vector<1x256xf32>
    %610 = arith.addf %605, %609 : vector<1x256xf32>
    %c62 = arith.constant 62 : index
    %611 = memref.load %arg4[%c62] : memref<98xf32, #tpu.memory_space<smem>>
    %c1_204 = arith.constant 1 : index
    %c99_205 = arith.constant 99 : index
    %612 = vector.load %arg6[%c1_204, %c99_205] : memref<2x512xf32, #tpu.memory_space<vmem>>, vector<1x256xf32>
    %613 = vector.broadcast %611 : f32 to vector<1x256xf32>
    %614 = arith.mulf %613, %612 : vector<1x256xf32>
    %615 = arith.addf %610, %614 : vector<1x256xf32>
    %c69 = arith.constant 69 : index
    %616 = memref.load %arg4[%c69] : memref<98xf32, #tpu.memory_space<smem>>
    %c1_206 = arith.constant 1 : index
    %c115_207 = arith.constant 115 : index
    %617 = vector.load %arg6[%c1_206, %c115_207] : memref<2x512xf32, #tpu.memory_space<vmem>>, vector<1x256xf32>
    %618 = vector.broadcast %616 : f32 to vector<1x256xf32>
    %619 = arith.mulf %618, %617 : vector<1x256xf32>
    %620 = arith.addf %615, %619 : vector<1x256xf32>
    %c76 = arith.constant 76 : index
    %621 = memref.load %arg4[%c76] : memref<98xf32, #tpu.memory_space<smem>>
    %c1_208 = arith.constant 1 : index
    %c131_209 = arith.constant 131 : index
    %622 = vector.load %arg6[%c1_208, %c131_209] : memref<2x512xf32, #tpu.memory_space<vmem>>, vector<1x256xf32>
    %623 = vector.broadcast %621 : f32 to vector<1x256xf32>
    %624 = arith.mulf %623, %622 : vector<1x256xf32>
    %625 = arith.addf %620, %624 : vector<1x256xf32>
    %c83_210 = arith.constant 83 : index
    %626 = memref.load %arg4[%c83_210] : memref<98xf32, #tpu.memory_space<smem>>
    %c1_211 = arith.constant 1 : index
    %c147_212 = arith.constant 147 : index
    %627 = vector.load %arg6[%c1_211, %c147_212] : memref<2x512xf32, #tpu.memory_space<vmem>>, vector<1x256xf32>
    %628 = vector.broadcast %626 : f32 to vector<1x256xf32>
    %629 = arith.mulf %628, %627 : vector<1x256xf32>
    %630 = arith.addf %625, %629 : vector<1x256xf32>
    %c90 = arith.constant 90 : index
    %631 = memref.load %arg4[%c90] : memref<98xf32, #tpu.memory_space<smem>>
    %c1_213 = arith.constant 1 : index
    %c163_214 = arith.constant 163 : index
    %632 = vector.load %arg6[%c1_213, %c163_214] : memref<2x512xf32, #tpu.memory_space<vmem>>, vector<1x256xf32>
    %633 = vector.broadcast %631 : f32 to vector<1x256xf32>
    %634 = arith.mulf %633, %632 : vector<1x256xf32>
    %635 = arith.addf %630, %634 : vector<1x256xf32>
    %c97_215 = arith.constant 97 : index
    %636 = memref.load %arg4[%c97_215] : memref<98xf32, #tpu.memory_space<smem>>
    %c1_216 = arith.constant 1 : index
    %c179_217 = arith.constant 179 : index
    %637 = vector.load %arg6[%c1_216, %c179_217] : memref<2x512xf32, #tpu.memory_space<vmem>>, vector<1x256xf32>
    %638 = vector.broadcast %636 : f32 to vector<1x256xf32>
    %639 = arith.mulf %638, %637 : vector<1x256xf32>
    %640 = arith.addf %635, %639 : vector<1x256xf32>
    %641 = arith.mulf %569, %640 : vector<1x256xf32>
    %642 = arith.addf %558, %641 : vector<1x256xf32>
    %643 = arith.negf %642 : vector<1x256xf32>
    %644 = math.exp %643 : vector<1x256xf32>
    %cst_218 = arith.constant 1.000000e+00 : f32
    %645 = vector.broadcast %cst_218 : f32 to vector<1x256xf32>
    %646 = arith.addf %645, %644 : vector<1x256xf32>
    %647 = arith.divf %645, %646 : vector<1x256xf32>
    %648 = vector.broadcast %647 : vector<1x256xf32> to vector<32x256xf32>
    %649 = arith.mulf %24, %648 : vector<32x256xf32>
    %c0_219 = arith.constant 0 : index
    %c0_220 = arith.constant 0 : index
    %c0_221 = arith.constant 0 : index
    %650 = vector.load %arg5[%c0_219, %c0_220, %c0_221] : memref<1x32x256xf32, #tpu.memory_space<vmem>>, vector<1x32x256xf32>
    %651 = vector.shape_cast %650 : vector<1x32x256xf32> to vector<32x256xf32>
    %652 = vector.shape_cast %649 : vector<32x256xf32> to vector<1x32x256xf32>
    tpu.vector_store %arg5[%c0_219, %c0_220, %c0_221], %652 {strides = array<i32>} : memref<1x32x256xf32, #tpu.memory_space<vmem>>, vector<1x32x256xf32>,
    return
  }
  func.func @transform_0(%arg0: i32) -> (i32, i32, i32) {
    %c0_i32 = arith.constant 0 : i32
    %c0_i32_0 = arith.constant 0 : i32
    %c0_i32_1 = arith.constant 0 : i32
    return %arg0, %c0_i32, %c0_i32_0 : i32, i32, i32
  }
  func.func @transform_1(%arg0: i32) -> (i32, i32) {
    %c0_i32 = arith.constant 0 : i32
    %c0_i32_0 = arith.constant 0 : i32
    %c0_i32_1 = arith.constant 0 : i32
    return %c0_i32, %c0_i32_0 : i32, i32
  }
  func.func @transform_2(%arg0: i32) -> (i32, i32) {
    %c0_i32 = arith.constant 0 : i32
    %c0_i32_0 = arith.constant 0 : i32
    %c0_i32_1 = arith.constant 0 : i32
    return %c0_i32, %c0_i32_0 : i32, i32
  }
  func.func @transform_3(%arg0: i32) -> i32 {
    %c0_i32 = arith.constant 0 : i32
    %c0_i32_0 = arith.constant 0 : i32
    return %c0_i32 : i32
  }
  func.func @transform_4(%arg0: i32) -> (i32, i32, i32) {
    %c0_i32 = arith.constant 0 : i32
    %c0_i32_0 = arith.constant 0 : i32
    %c0_i32_1 = arith.constant 0 : i32
    return %arg0, %c0_i32, %c0_i32_0 : i32, i32, i32
  }
}

</mosaic_0001>

<llo_original>
// kernel: tpu_custom_call.1
$region0: #{tpu_custom_call.1}
  #allocation0 [shape = 'u32[]', space=smem, size = 0x4, offset = 0x4, fixed_abs, tag = 'smem constant byte address 0x4 - core index']
  #allocation1 [shape = 'u32[144,128]{1,0:T(1,128)}', space=vmem, size = 0x12000, scoped, tag = 'internal scratch']
  #allocation2 [shape = 'f32[2,512]{1,0:T(2,128)}', space=vmem, size = 0x1000, scoped, tag = 'scratch operand']
  %s0 = inlined_call_operand.hbm [shape: f32[2,32,256], index: 0, kind: input, shape index: {}]
  %s1 = inlined_call_operand.vmem [shape: f32[2,32], index: 1, kind: input, shape index: {}]
  %s2 = inlined_call_operand.vmem [shape: f32[32,2], index: 2, kind: input, shape index: {}]
  %s3 = inlined_call_operand.vmem [shape: f32[98], index: 3, kind: input, shape index: {}]
  %s4 = inlined_call_operand.hbm [shape: f32[2,32,256], index: 4, kind: output, shape index: {}]
  %s5 = sld [smem:[#allocation0]]
  $region57: #{tpu_custom_call.1} parent=0
    _
  %s7 = ssub.s32 1, %s5
  %s8 = scalar_select 0, %s7, %s5
  $region1: #{tpu_custom_call.1} parent=0
    #allocation3 [shape = 'u8[65536]{0}', space=vmem, size = 0x10000, scoped, tag = 'input window, operand 0']
    #allocation4 [shape = 's32[2]{0}', space=sflag, size = 0x8, scoped, tag = 'scoped memory for tpu_custom_call.1']
    #allocation5 [shape = 's32[2]{0}', space=sflag, size = 0x8, scoped, tag = 'scoped memory for tpu_custom_call.1']
    #allocation6 [shape = 's32[2]{0}', space=sflag, size = 0x8, scoped, tag = 'scoped memory for tpu_custom_call.1']
    #allocation7 [shape = 'u8[512]{0}', space=smem, size = 0x200, scoped, tag = 'input window, operand 3, single buffered']
    #allocation8 [shape = 'u8[65536]{0}', space=vmem, size = 0x10000, scoped, tag = 'output window, operand 0']
    %9 = vsyncpa [#allocation4], 0
    %s10 = scalar_lea.sflag [#allocation4], 1
    %11 = vsyncpa %s10, 0
    %12 = vsyncpa [#allocation6], 0
    %13 = vsyncpa [#allocation5], 0
    %s14 = scalar_lea.sflag [#allocation5], 1
    %15 = vsyncpa %s14, 0
    loop: start=0, step=1, limit=4
    $region2: #{tpu_custom_call.1} parent=1 // loop_pre_header
      _
    $region3: #{tpu_custom_call.1} parent=1 // loop_header
      %s17 = sphi 0, %s21
      %p18 = scmp.ge.s32.totalorder %s17, 4
      %s27 = sphi 0, %s29
      %s30 = sphi 0, %s27
      %s31 = sphi 0, %s30
      %s47 = sphi 0, %s31
      %s51 = sphi 0, %s51
      %s53 = sphi 0, %s51
      %s54 = sphi 0, %s53
      %s68 = sphi 0, %s54
      %s72 = sphi 0, %s72
      %s74 = sphi 0, %s72
      %s75 = sphi 0, %s74
      %s89 = sphi 0, %s75
      %s93 = sphi 0, %s93
      %s95 = sphi 0, %s93
      %s96 = sphi 0, %s95
      %s110 = sphi 0, %s96
      %s116 = sphi 0, %s118
      %s119 = sphi 0, %s116
      %s120 = sphi 0, %s119
      %s136 = sphi 0, %s120
    $region4: #{tpu_custom_call.1} parent=1 // loop_header_branch
      %20 = sbr.rel (%p18) target = $region8
    $region5: #{tpu_custom_call.1} parent=1 // loop_body
      %s22 = ssub.s32 %s17, 1
      %s23 = ssub.s32 %s17, 2
      %s24 = sadd.s32 %s17, 1
      %s25 = ssub.s32 %s17, %s24
      %p26 = scmp.eq.s32.totalorder %s25, 0
      %s28 = sadd.s32 %s27, 1
      %s29 = scalar_select %p26, %s27, %s28
      %p32 = pneg %p26
      %p33 = scmp.eq.s32.totalorder %s17, 1
      %p34 = por %p32, %p33
      %p35 = scmp.ne.s32.totalorder %s27, %s30
      %p36 = scmp.eq.s32.totalorder %s17, 0
      %p37 = por %p35, %p36
      %p38 = scmp.ne.s32.totalorder %s27, %s30
      %p39 = scmp.eq.s32.totalorder %s22, 1
      %p40 = por %p38, %p39
      %p41 = scmp.ne.s32.totalorder %s30, %s31
      %p42 = scmp.eq.s32.totalorder %s22, 0
      %p43 = por %p41, %p42
      %p44 = scmp.ne.s32.totalorder %s30, %s31
      %p45 = scmp.eq.s32.totalorder %s23, 1
      %p46 = por %p44, %p45
      %p48 = scmp.ne.s32.totalorder %s31, %s47
      %p49 = scmp.eq.s32.totalorder %s23, 0
      %p50 = por %p48, %p49
      %s52 = sadd.s32 %s51, 1
      %p55 = scmp.eq.s32.totalorder %s17, 1
      %p56 = scmp.ne.s32.totalorder %s51, %s53
      %p57 = scmp.eq.s32.totalorder %s17, 0
      %p58 = por %p56, %p57
      %p59 = scmp.ne.s32.totalorder %s51, %s53
      %p60 = scmp.eq.s32.totalorder %s22, 1
      %p61 = por %p59, %p60
      %p62 = scmp.ne.s32.totalorder %s53, %s54
      %p63 = scmp.eq.s32.totalorder %s22, 0
      %p64 = por %p62, %p63
      %p65 = scmp.ne.s32.totalorder %s53, %s54
      %p66 = scmp.eq.s32.totalorder %s23, 1
      %p67 = por %p65, %p66
      %p69 = scmp.ne.s32.totalorder %s54, %s68
      %p70 = scmp.eq.s32.totalorder %s23, 0
      %p71 = por %p69, %p70
      %s73 = sadd.s32 %s72, 1
      %p76 = scmp.eq.s32.totalorder %s17, 1
      %p77 = scmp.ne.s32.totalorder %s72, %s74
      %p78 = scmp.eq.s32.totalorder %s17, 0
      %p79 = por %p77, %p78
      %p80 = scmp.ne.s32.totalorder %s72, %s74
      %p81 = scmp.eq.s32.totalorder %s22, 1
      %p82 = por %p80, %p81
      %p83 = scmp.ne.s32.totalorder %s74, %s75
      %p84 = scmp.eq.s32.totalorder %s22, 0
      %p85 = por %p83, %p84
      %p86 = scmp.ne.s32.totalorder %s74, %s75
      %p87 = scmp.eq.s32.totalorder %s23, 1
      %p88 = por %p86, %p87
      %p90 = scmp.ne.s32.totalorder %s75, %s89
      %p91 = scmp.eq.s32.totalorder %s23, 0
      %p92 = por %p90, %p91
      %s94 = sadd.s32 %s93, 1
      %p97 = scmp.eq.s32.totalorder %s17, 1
      %p98 = scmp.ne.s32.totalorder %s93, %s95
      %p99 = scmp.eq.s32.totalorder %s17, 0
      %p100 = por %p98, %p99
      %p101 = scmp.ne.s32.totalorder %s93, %s95
      %p102 = scmp.eq.s32.totalorder %s22, 1
      %p103 = por %p101, %p102
      %p104 = scmp.ne.s32.totalorder %s95, %s96
      %p105 = scmp.eq.s32.totalorder %s22, 0
      %p106 = por %p104, %p105
      %p107 = scmp.ne.s32.totalorder %s95, %s96
      %p108 = scmp.eq.s32.totalorder %s23, 1
      %p109 = por %p107, %p108
      %p111 = scmp.ne.s32.totalorder %s96, %s110
      %p112 = scmp.eq.s32.totalorder %s23, 0
      %p113 = por %p111, %p112
      %s114 = ssub.s32 %s17, %s24
      %p115 = scmp.eq.s32.totalorder %s114, 0
      %s117 = sadd.s32 %s116, 1
      %s118 = scalar_select %p115, %s116, %s117
      %p121 = pneg %p115
      %p122 = scmp.eq.s32.totalorder %s17, 1
      %p123 = por %p121, %p122
      %p124 = scmp.ne.s32.totalorder %s116, %s119
      %p125 = scmp.eq.s32.totalorder %s17, 0
      %p126 = por %p124, %p125
      %p127 = scmp.ne.s32.totalorder %s116, %s119
      %p128 = scmp.eq.s32.totalorder %s22, 1
      %p129 = por %p127, %p128
      %p130 = scmp.ne.s32.totalorder %s119, %s120
      %p131 = scmp.eq.s32.totalorder %s22, 0
      %p132 = por %p130, %p131
      %p133 = scmp.ne.s32.totalorder %s119, %s120
      %p134 = scmp.eq.s32.totalorder %s23, 1
      %p135 = por %p133, %p134
      %p137 = scmp.ne.s32.totalorder %s120, %s136
      %p138 = scmp.eq.s32.totalorder %s23, 0
      %p139 = por %p137, %p138
      %p140 = scmp.le.s32.totalorder 1, %s17
      %p141 = scmp.lt.s32.totalorder %s17, 3
      %p142 = pnand %p140, %p141
      %p143 = pneg %p142
      // Predicated region
      $region9: #{tpu_custom_call.1} parent=5 // pred_check
        _
      $region10: #{tpu_custom_call.1} parent=5 // pred_check_branch
        %145 = sbr.rel (%p142) target = $region12
      $region11: #{tpu_custom_call.1} parent=5 // pred_region
        %s146 = ssub.s32 %s17, 1
        // Predicated region
        $region13: #{tpu_custom_call.1} parent=11 // pred_check
          %p147 = pneg %p64
        $region14: #{tpu_custom_call.1} parent=11 // pred_check_branch
          %149 = sbr.rel (%p147) target = $region16
        $region15: #{tpu_custom_call.1} parent=11 // pred_region
          _
        $region16: #{tpu_custom_call.1} parent=11 // pred_fallthru
          _
        // Predicated region
        $region17: #{tpu_custom_call.1} parent=11 // pred_check
          %p150 = pneg %p85
        $region18: #{tpu_custom_call.1} parent=11 // pred_check_branch
          %152 = sbr.rel (%p150) target = $region20
        $region19: #{tpu_custom_call.1} parent=11 // pred_region
          _
        $region20: #{tpu_custom_call.1} parent=11 // pred_fallthru
          _
        // Predicated region
        $region21: #{tpu_custom_call.1} parent=11 // pred_check
          %p153 = pneg %p106
        $region22: #{tpu_custom_call.1} parent=11 // pred_check_branch
          %155 = sbr.rel (%p153) target = $region24
        $region23: #{tpu_custom_call.1} parent=11 // pred_region
          %s157 = ssub.s32 16, 16
          %158 = vsyncadd [#allocation6], %s157
          %s160 = sshll.u32 %s3, 4
          %s161 = int_to_ptr.vmem [resolvable:$true] %s160
          %163 = dma.vmem_to_smem %s161, 16, [#allocation7], [#allocation6]
        $region24: #{tpu_custom_call.1} parent=11 // pred_fallthru
          _
      $region12: #{tpu_custom_call.1} parent=5 // pred_fallthru
        _
      %p164 = scmp.lt.s32.totalorder %s17, 2
      // Predicated region
      $region25: #{tpu_custom_call.1} parent=5 // pred_check
        %p165 = pneg %p164
      $region26: #{tpu_custom_call.1} parent=5 // pred_check_branch
        %167 = sbr.rel (%p165) target = $region28
      $region27: #{tpu_custom_call.1} parent=5 // pred_region
        // Predicated region
        $region29: #{tpu_custom_call.1} parent=27 // pred_check
          %p168 = pneg %p37
        $region30: #{tpu_custom_call.1} parent=27 // pred_check_branch
          %170 = sbr.rel (%p168) target = $region32
        $region31: #{tpu_custom_call.1} parent=27 // pred_region
          %s171 = sand.u32 %s27, 1
          %s172 = scalar_lea.sflag [#allocation4], %s171
          %s173 = sand.u32 %s27, 1
          %s174 = smul.addr %s173, 64
          %s175 = scalar_lea.vmem [#allocation3], %s174
          %s177 = ssub.s32 1024, 1024
          %178 = vsyncadd %s172, %s177
          %s179 = smul.addr %s17, 8
          %s180 = smul.addr %s179, 128
          %s181 = scalar_lea.hbm %s0, %s180
          %s182 = sshll.u32 %s175, 4
          %s183 = int_to_ptr.vmem [resolvable:$true] %s182
          %188 = dma.hbm_to_vmem [thread:$0]  %s181, 1024, %s183, %s172, 256, 256, 16
        $region32: #{tpu_custom_call.1} parent=27 // pred_fallthru
          _
      $region28: #{tpu_custom_call.1} parent=5 // pred_fallthru
        _
      %p189 = scmp.le.s32.totalorder 1, %s17
      %p190 = scmp.lt.s32.totalorder %s17, 3
      %p191 = pnand %p189, %p190
      %p192 = pneg %p191
      // Predicated region
      $region33: #{tpu_custom_call.1} parent=5 // pred_check
        _
      $region34: #{tpu_custom_call.1} parent=5 // pred_check_branch
        %194 = sbr.rel (%p191) target = $region36
      $region35: #{tpu_custom_call.1} parent=5 // pred_region
        %s195 = ssub.s32 %s17, 1
        %s196 = sand.u32 %s30, 1
        %s197 = scalar_lea.sflag [#allocation4], %s196
        %s198 = sand.u32 %s30, 1
        %s199 = smul.addr %s198, 64
        %s200 = scalar_lea.vmem [#allocation3], %s199
        // Predicated region
        $region37: #{tpu_custom_call.1} parent=35 // pred_check
          %p201 = pneg %p43
        $region38: #{tpu_custom_call.1} parent=35 // pred_check_branch
          %203 = sbr.rel (%p201) target = $region40
        $region39: #{tpu_custom_call.1} parent=35 // pred_region
          %204 = dma.done %s197, 1024
        $region40: #{tpu_custom_call.1} parent=35 // pred_fallthru
          _
        // Predicated region
        $region41: #{tpu_custom_call.1} parent=35 // pred_check
          %p205 = pneg %p106
        $region42: #{tpu_custom_call.1} parent=35 // pred_check_branch
          %207 = sbr.rel (%p205) target = $region44
        $region43: #{tpu_custom_call.1} parent=35 // pred_region
          %208 = dma.done [#allocation6], 16
        $region44: #{tpu_custom_call.1} parent=35 // pred_fallthru
          _
        %209 = sfence
        %s210 = sand.u32 %s30, 1
        %s211 = scalar_lea.sflag [#allocation4], %s210
        %s212 = sand.u32 %s30, 1
        %s213 = smul.addr %s212, 64
        %s214 = scalar_lea.vmem [#allocation3], %s213
        %p215 = pneg %p43
        %p216 = pneg %p40
        %p217 = pneg %p64
        %p218 = pneg %p61
        %p219 = pneg %p85
        %p220 = pneg %p82
        %p221 = pneg %p106
        %p222 = pneg %p103
        %p223 = pneg %p132
        %p224 = pneg %p129
        %s225 = sand.u32 %s119, 1
        %s226 = scalar_lea.sflag [#allocation5], %s225
        %s227 = sand.u32 %s119, 1
        %s228 = smul.addr %s227, 64
        %s229 = scalar_lea.vmem [#allocation8], %s228
        %v230 = vld [vmem:[%s200] sm:$0xff]
        %v231 = vld [vmem:[%s200 + $0x8] sm:$0xff]
        %v232 = vld [vmem:[%s200 + $0x10] sm:$0xff]
        %v233 = vld [vmem:[%s200 + $0x18] sm:$0xff]
        %v234 = vld [vmem:[%s200 + $0x20] sm:$0xff]
        %v235 = vld [vmem:[%s200 + $0x28] sm:$0xff]
        %v236 = vld [vmem:[%s200 + $0x30] sm:$0xff]
        %v237 = vld [vmem:[%s200 + $0x38] sm:$0xff]
        %v238 = vmax.f32 %v230, %v231
        %239 = vmax.xlane.f32.xlu0 %v238
        %v240 = vpop.xlane.xlu0 %239
        %v241 = vmax.f32 %v232, %v233
        %242 = vmax.xlane.f32.xlu0 %v241
        %v243 = vpop.xlane.xlu0 %242
        %v244 = vmax.f32 %v234, %v235
        %245 = vmax.xlane.f32.xlu0 %v244
        %v246 = vpop.xlane.xlu0 %245
        %v247 = vmax.f32 %v236, %v237
        %248 = vmax.xlane.f32.xlu0 %v247
        %v249 = vpop.xlane.xlu0 %248
        %v250 = vadd.f32 %v230, %v231
        %251 = vadd.xlane.f32.xlu0 %v250
        %v252 = vpop.xlane.xlu0 %251
        %v253 = vadd.f32 %v232, %v233
        %254 = vadd.xlane.f32.xlu0 %v253
        %v255 = vpop.xlane.xlu0 %254
        %v256 = vadd.f32 %v234, %v235
        %257 = vadd.xlane.f32.xlu0 %v256
        %v258 = vpop.xlane.xlu0 %257
        %v259 = vadd.f32 %v236, %v237
        %260 = vadd.xlane.f32.xlu0 %v259
        %v261 = vpop.xlane.xlu0 %260
        %v262 = vmul.f32 %v252, 0.00390625
        %v263 = vmul.f32 %v255, 0.00390625
        %v264 = vmul.f32 %v258, 0.00390625
        %v265 = vmul.f32 %v261, 0.00390625
        %vm266 = vcmask 7168
        %v267 = vsel %vm266, %v240, %v262
        %v268 = vsel %vm266, %v243, %v263
        %v269 = vsel %vm266, %v246, %v264
        %v270 = vsel %vm266, %v249, %v265
        %v271 = vld [vmem:[%s1] sm:$0x3]
        %vm272 = vcmask 261120
        %v274 = vsel %vm272, %v271, 0
        %276 = vmatprep.subr.mxu0 0.0
        %277 = vmatpush1.msra.mxu0 0.0
        %278 = vmatprep.subr.mxu0 0.0
        %279 = vmatpush1.msra.mxu0 0.0
        %280 = vmatprep.subr.mxu0 0.0
        %281 = vmatpush1.msra.mxu0 0.0
        %282 = vmatprep.subr.mxu0 0.0
        %283 = vmatpush1.msra.mxu0 0.0
        %284 = vmatprep.subr.mxu0 0.0
        %285 = vmatpush1.msra.mxu0 0.0
        %286 = vmatprep.subr.mxu0 0.0
        %287 = vmatpush1.msra.mxu0 0.0
        %288 = vmatprep.subr.mxu0 0.0
        %289 = vmatpush1.msra.mxu0 0.0
        %290 = vmatprep.subr.mxu0 0.0
        %291 = vmatpush1.msra.mxu0 0.0
        %292 = vmatprep.subr.mxu0 0.0
        %293 = vmatpush1.msra.mxu0 0.0
        %294 = vmatprep.subr.mxu0 0.0
        %295 = vmatpush1.msra.mxu0 0.0
        %296 = vmatprep.subr.mxu0 0.0
        %297 = vmatpush1.msra.mxu0 0.0
        %298 = vmatprep.subr.mxu0 0.0
        %299 = vmatpush1.msra.mxu0 0.0
        %300 = vmatprep.subr.mxu0 0.0
        %301 = vmatpush1.msra.mxu0 %v270
        %302 = vmatprep.subr.mxu0 0.0
        %303 = vmatpush1.msra.mxu0 %v269
        %304 = vmatprep.subr.mxu0 0.0
        %305 = vmatpush1.msra.mxu0 %v268
        %306 = vmatprep.subr.mxu0 0.0
        %307 = vmatpush1.msra.mxu0 %v267
        %308 = vmatprep.subr.mxu0 0.0
        %309 = vmatpush2.msra.mxu0 0.0
        %310 = vmatprep.subr.mxu0 0.0
        %311 = vmatpush2.msra.mxu0 0.0
        %312 = vmatprep.subr.mxu0 0.0
        %313 = vmatpush2.msra.mxu0 0.0
        %314 = vmatprep.subr.mxu0 0.0
        %315 = vmatpush2.msra.mxu0 0.0
        %316 = vmatprep.subr.mxu0 0.0
        %317 = vmatpush2.msra.mxu0 0.0
        %318 = vmatprep.subr.mxu0 0.0
        %319 = vmatpush2.msra.mxu0 0.0
        %320 = vmatprep.subr.mxu0 0.0
        %321 = vmatpush2.msra.mxu0 0.0
        %322 = vmatprep.subr.mxu0 0.0
        %323 = vmatpush2.msra.mxu0 0.0
        %324 = vmatprep.subr.mxu0 0.0
        %325 = vmatpush2.msra.mxu0 0.0
        %326 = vmatprep.subr.mxu0 0.0
        %327 = vmatpush2.msra.mxu0 0.0
        %328 = vmatprep.subr.mxu0 0.0
        %329 = vmatpush2.msra.mxu0 0.0
        %330 = vmatprep.subr.mxu0 0.0
        %331 = vmatpush2.msra.mxu0 0.0
        %332 = vmatprep.subr.mxu0 0.0
        %333 = vmatpush2.msra.mxu0 0.0
        %334 = vmatprep.subr.mxu0 0.0
        %335 = vmatpush2.msra.mxu0 0.0
        %336 = vmatprep.subr.mxu0 0.0
        %337 = vmatpush2.msra.mxu0 0.0
        %338 = vmatprep.subr.mxu0 0.0
        %339 = vmatpush2.msra.mxu0 0.0
        %340 = vmatprep.mubr.f32.mxu0 0.0
        %341 = vmatmul.mubr.f32.gmra.mxu0 %v274
        %v342 = vpop.f32.mrf.mxu0
        %v343 = vadd.f32 0.0, %v342
        %v344 = vpop.f32.mrf.mxu0
        %345 = vdwg.mxu0
        %v346 = vmax.f32 %v343, 0.0
        %v347 = vld [vmem:[%s2] sm:$0xff]
        %v348 = vld [vmem:[%s2 + $0x8] sm:$0xff]
        %v349 = vld [vmem:[%s2 + $0x10] sm:$0xff]
        %v350 = vld [vmem:[%s2 + $0x18] sm:$0xff]
        %vm351 = vcmask 15360
        %v353 = vsel %vm351, %v347, 0
        %v356 = vsel %vm351, %v348, 0
        %v359 = vsel %vm351, %v349, 0
        %v362 = vsel %vm351, %v350, 0
        %vm364 = vcmask 1041408
        %v366 = vsel %vm364, %v346, 0
        %368 = vmatprep.subr.mxu0 0.0
        %369 = vmatpush1.msra.mxu0 0.0
        %370 = vmatprep.subr.mxu0 0.0
        %371 = vmatpush1.msra.mxu0 0.0
        %372 = vmatprep.subr.mxu0 0.0
        %373 = vmatpush1.msra.mxu0 0.0
        %374 = vmatprep.subr.mxu0 0.0
        %375 = vmatpush1.msra.mxu0 0.0
        %376 = vmatprep.subr.mxu0 0.0
        %377 = vmatpush1.msra.mxu0 0.0
        %378 = vmatprep.subr.mxu0 0.0
        %379 = vmatpush1.msra.mxu0 0.0
        %380 = vmatprep.subr.mxu0 0.0
        %381 = vmatpush1.msra.mxu0 0.0
        %382 = vmatprep.subr.mxu0 0.0
        %383 = vmatpush1.msra.mxu0 0.0
        %384 = vmatprep.subr.mxu0 0.0
        %385 = vmatpush1.msra.mxu0 0.0
        %386 = vmatprep.subr.mxu0 0.0
        %387 = vmatpush1.msra.mxu0 0.0
        %388 = vmatprep.subr.mxu0 0.0
        %389 = vmatpush1.msra.mxu0 0.0
        %390 = vmatprep.subr.mxu0 0.0
        %391 = vmatpush1.msra.mxu0 0.0
        %392 = vmatprep.subr.mxu0 0.0
        %393 = vmatpush1.msra.mxu0 0.0
        %394 = vmatprep.subr.mxu0 0.0
        %395 = vmatpush1.msra.mxu0 0.0
        %396 = vmatprep.subr.mxu0 0.0
        %397 = vmatpush1.msra.mxu0 0.0
        %398 = vmatprep.subr.mxu0 0.0
        %399 = vmatpush1.msra.mxu0 %v366
        %400 = vmatprep.subr.mxu0 0.0
        %401 = vmatpush2.msra.mxu0 0.0
        %402 = vmatprep.subr.mxu0 0.0
        %403 = vmatpush2.msra.mxu0 0.0
        %404 = vmatprep.subr.mxu0 0.0
        %405 = vmatpush2.msra.mxu0 0.0
        %406 = vmatprep.subr.mxu0 0.0
        %407 = vmatpush2.msra.mxu0 0.0
        %408 = vmatprep.subr.mxu0 0.0
        %409 = vmatpush2.msra.mxu0 0.0
        %410 = vmatprep.subr.mxu0 0.0
        %411 = vmatpush2.msra.mxu0 0.0
        %412 = vmatprep.subr.mxu0 0.0
        %413 = vmatpush2.msra.mxu0 0.0
        %414 = vmatprep.subr.mxu0 0.0
        %415 = vmatpush2.msra.mxu0 0.0
        %416 = vmatprep.subr.mxu0 0.0
        %417 = vmatpush2.msra.mxu0 0.0
        %418 = vmatprep.subr.mxu0 0.0
        %419 = vmatpush2.msra.mxu0 0.0
        %420 = vmatprep.subr.mxu0 0.0
        %421 = vmatpush2.msra.mxu0 0.0
        %422 = vmatprep.subr.mxu0 0.0
        %423 = vmatpush2.msra.mxu0 0.0
        %424 = vmatprep.subr.mxu0 0.0
        %425 = vmatpush2.msra.mxu0 0.0
        %426 = vmatprep.subr.mxu0 0.0
        %427 = vmatpush2.msra.mxu0 0.0
        %428 = vmatprep.subr.mxu0 0.0
        %429 = vmatpush2.msra.mxu0 0.0
        %430 = vmatprep.subr.mxu0 0.0
        %431 = vmatpush2.msra.mxu0 0.0
        %432 = vmatprep.mubr.f32.mxu0 0.0
        %433 = vmatmul.mubr.f32.gmra.mxu0 %v353
        %v434 = vpop.f32.mrf.mxu0
        %v435 = vadd.f32 0.0, %v434
        %v436 = vpop.f32.mrf.mxu0
        %437 = vmatprep.mubr.f32.mxu0 0.0
        %438 = vmatmul.mubr.f32.gmra.mxu0 %v356
        %v439 = vpop.f32.mrf.mxu0
        %v440 = vadd.f32 0.0, %v439
        %v441 = vpop.f32.mrf.mxu0
        %442 = vmatprep.mubr.f32.mxu0 0.0
        %443 = vmatmul.mubr.f32.gmra.mxu0 %v359
        %v444 = vpop.f32.mrf.mxu0
        %v445 = vadd.f32 0.0, %v444
        %v446 = vpop.f32.mrf.mxu0
        %447 = vmatprep.mubr.f32.mxu0 0.0
        %448 = vmatmul.mubr.f32.gmra.mxu0 %v362
        %v449 = vpop.f32.mrf.mxu0
        %v450 = vadd.f32 0.0, %v449
        %v451 = vpop.f32.mrf.mxu0
        %452 = vdwg.mxu0
        %457 = vrot.lane.b32.xlu0 %v435, 127
        %v458 = vpop.permute.xlu0 %457
        %459 = vrot.lane.b32.xlu0 %v440, 127
        %v460 = vpop.permute.xlu0 %459
        %461 = vrot.lane.b32.xlu0 %v445, 127
        %v462 = vpop.permute.xlu0 %461
        %463 = vrot.lane.b32.xlu0 %v450, 127
        %v464 = vpop.permute.xlu0 %463
        %v469 = vadd.f32 %v435, %v458
        %v470 = vadd.f32 %v440, %v460
        %v471 = vadd.f32 %v445, %v462
        %v472 = vadd.f32 %v450, %v464
        %v473 = vxor.u32 %v469, 2147483648
        %v474 = vxor.u32 %v470, 2147483648
        %v475 = vxor.u32 %v471, 2147483648
        %v476 = vxor.u32 %v472, 2147483648
        %v477 = vmul.f32 %v473, 1.442695
        %v478 = vpow.pop %v477
        %v479 = vmul.f32 %v474, 1.442695
        %v480 = vpow.pop %v479
        %v481 = vmul.f32 %v475, 1.442695
        %v482 = vpow.pop %v481
        %v483 = vmul.f32 %v476, 1.442695
        %v484 = vpow.pop %v483
        %v485 = vadd.f32 %v478, 1.0
        %v486 = vadd.f32 %v480, 1.0
        %v487 = vadd.f32 %v482, 1.0
        %v488 = vadd.f32 %v484, 1.0
        %v489 = vrcp.pop %v485
        %v490 = vmul.f32 1.0, %v489
        %v491 = vrcp.pop %v486
        %v492 = vmul.f32 1.0, %v491
        %v493 = vrcp.pop %v487
        %v494 = vmul.f32 1.0, %v493
        %v495 = vrcp.pop %v488
        %v496 = vmul.f32 1.0, %v495
        %498 = vset.pattern.permute.xlu0 0
        %499 = vperm.xlu0 %498, %v490
        %v500 = vpop.permute.xlu0 %499
        %503 = vset.pattern.permute.xlu0 0
        %504 = vperm.xlu0 %503, %v492
        %v505 = vpop.permute.xlu0 %504
        %508 = vset.pattern.permute.xlu0 0
        %509 = vperm.xlu0 %508, %v494
        %v510 = vpop.permute.xlu0 %509
        %513 = vset.pattern.permute.xlu0 0
        %514 = vperm.xlu0 %513, %v496
        %v515 = vpop.permute.xlu0 %514
        %v517 = vmul.f32 %v230, %v500
        %v518 = vmul.f32 %v231, %v500
        %v519 = vmul.f32 %v232, %v505
        %v520 = vmul.f32 %v233, %v505
        %v521 = vmul.f32 %v234, %v510
        %v522 = vmul.f32 %v235, %v510
        %v523 = vmul.f32 %v236, %v515
        %v524 = vmul.f32 %v237, %v515
        %525 = vst [vmem:[#allocation2] sm:$0x3] 0.0
        %526 = vst [vmem:[#allocation2 + $0x6] sm:$0x3] 0.0
        %v527 = vmax.f32 %v517, %v521
        %v528 = vmax.f32 %v519, %v523
        %v529 = vmax.f32 %v527, %v528
        %v530 = vrot.slane %v529, 4
        %v531 = vmax.f32 %v529, %v530
        %v532 = vrot.slane %v531, 2
        %v533 = vmax.f32 %v531, %v532
        %v534 = vrot.slane %v533, 1
        %v535 = vmax.f32 %v533, %v534
        %v536 = vmax.f32 %v518, %v522
        %v537 = vmax.f32 %v520, %v524
        %v538 = vmax.f32 %v536, %v537
        %v539 = vrot.slane %v538, 4
        %v540 = vmax.f32 %v538, %v539
        %v541 = vrot.slane %v540, 2
        %v542 = vmax.f32 %v540, %v541
        %v543 = vrot.slane %v542, 1
        %v544 = vmax.f32 %v542, %v543
        %v547 = vcombine.low %v535, %v544
        %v549 = vunpack.c.l.s4 1966171168
        %v550 = vunpack.c.0.s8 %v549
        %v551 = vlaneseq
        %v552 = vshrl.u32 %v551, 7
        %v553 = vsub.s32 %v550, %v552
        %v554 = vrot.slane %v547, %v553
        %v556 = vunpack.c.l.s4 1966171168
        %v557 = vunpack.c.0.s8 %v556
        %v558 = vlaneseq
        %v559 = vshrl.u32 %v558, 7
        %v560 = vsub.s32 %v557, %v559
        %v561 = vrot.slane %v554, %v560
        %v563 = vlaneseq
        %vm564 = vcmp.ge.s32.totalorder %v563, 0
        %vm565 = vcmp.lt.s32.totalorder %v563, 256
        %vm566 = vmand %vm564, %vm565
        %s567 = scalar_lea.vmem [#allocation2], 2
        %568 = vst.msk [vmem:[%s567] ss:$2 sm:$0x3] %vm566, %v561
        %v569 = vadd.f32 %v517, %v519
        %v570 = vadd.f32 %v569, %v521
        %v571 = vadd.f32 %v570, %v523
        %v572 = vrot.slane %v571, 4
        %v573 = vadd.f32 %v571, %v572
        %v574 = vrot.slane %v573, 2
        %v575 = vadd.f32 %v573, %v574
        %v576 = vrot.slane %v575, 1
        %v577 = vadd.f32 %v575, %v576
        %v578 = vadd.f32 %v518, %v520
        %v579 = vadd.f32 %v578, %v522
        %v580 = vadd.f32 %v579, %v524
        %v581 = vrot.slane %v580, 4
        %v582 = vadd.f32 %v580, %v581
        %v583 = vrot.slane %v582, 2
        %v584 = vadd.f32 %v582, %v583
        %v585 = vrot.slane %v584, 1
        %v586 = vadd.f32 %v584, %v585
        %v587 = vmul.f32 %v577, 0.03125
        %v588 = vmul.f32 %v586, 0.03125
        %v591 = vcombine.low %v587, %v588
        %v593 = vunpack.c.l.s4 1966171168
        %v594 = vunpack.c.0.s8 %v593
        %v595 = vlaneseq
        %v596 = vshrl.u32 %v595, 7
        %v597 = vsub.s32 %v594, %v596
        %v598 = vrot.slane %v591, %v597
        %v600 = vunpack.c.l.s4 1966171168
        %v601 = vunpack.c.0.s8 %v600
        %v602 = vlaneseq
        %v603 = vshrl.u32 %v602, 7
        %v604 = vsub.s32 %v601, %v603
        %v605 = vrot.slane %v598, %v604
        %s607 = scalar_lea.vmem [#allocation2], 3
        %608 = vst.msk [vmem:[%s607] ss:$2 sm:$0x3] %vm566, %v605
        %v609 = vlaneseq
        %v610 = vand.u32 %v609, 127
        %v611 = vadd.s32 %v610, 128
        %vm612 = vcmp.lt.s32.totalorder %v610, 0
        %v613 = vsub.s32 0, %v610
        %v614 = vsel %vm612, %v613, %v610
        %v615 = vshrl.u32 %v614, 4
        %v616 = vand.u32 %v614, 15
        %v617 = vsub.s32 0, %v616
        %v618 = vsel %vm612, %v617, %v616
        %vm619 = vcmp.lt.s32.totalorder %v611, 0
        %v620 = vsub.s32 0, %v611
        %v621 = vsel %vm619, %v620, %v611
        %v622 = vshrl.u32 %v621, 4
        %v623 = vand.u32 %v621, 15
        %v624 = vsub.s32 0, %v623
        %v625 = vsel %vm619, %v624, %v623
        %vm626 = vcmp.ne.s32.totalorder %v618, 0
        %vm627 = vcmp.ne.s32.totalorder %v625, 0
        %vm628 = vcmp.lt.s32.totalorder %v618, 0
        %vm629 = vcmp.lt.s32.totalorder %v625, 0
        %vm630 = vmand %vm628, %vm626
        %vm631 = vmand %vm629, %vm627
        %v632 = vadd.s32 %v618, 16
        %v633 = vadd.s32 %v625, 16
        %v634 = vsel %vm630, %v632, %v618
        %v635 = vsel %vm631, %v633, %v625
        %v636 = vadd.s32 %v634, 4294967293
        %v637 = vadd.s32 %v635, 4294967293
        %vm638 = vcmp.ge.s32.totalorder %v636, 0
        %vm639 = vcmp.ge.s32.totalorder %v637, 0
        %vm640 = vcmp.lt.s32.totalorder %v636, 16
        %vm641 = vcmp.lt.s32.totalorder %v637, 16
        %vm642 = vmand %vm638, %vm640
        %vm643 = vmand %vm639, %vm641
        %v644 = vsel %vm642, 1, 0
        %v645 = vsel %vm643, 1, 0
        %v646 = vcvt.s32.f32 %v644
        %v647 = vcvt.s32.f32 %v645
        %s648 = sld [smem:[#allocation7]]
        %v649 = vld [vmem:[#allocation2] ss:$2 sm:$0x7]
        %v650 = vstv %s648
        %v651 = vmul.f32 %v650, %v649
        %v652 = vadd.f32 %v651, 0.0
        %s653 = sld [smem:[#allocation7 + $0x7]]
        %v654 = vstv %s653
        %v655 = vmul.f32 %v654, %v649
        %657 = vrot.lane.b32.xlu0 %v655, 112
        %v658 = vpop.permute.xlu0 %657
        %v659 = vrot.slane %v658, 1
        %vm660 = vcmask 916480
        %v661 = vsel %vm660, %v658, %v659
        %v663 = vadd.f32 %v652, %v661
        %s664 = sld [smem:[#allocation7 + $0xe]]
        %v665 = vstv %s664
        %v666 = vmul.f32 %v665, %v649
        %668 = vrot.lane.b32.xlu0 %v666, 96
        %v669 = vpop.permute.xlu0 %668
        %v670 = vrot.slane %v669, 1
        %vm671 = vcmask 785408
        %v672 = vsel %vm671, %v669, %v670
        %v674 = vadd.f32 %v663, %v672
        %s675 = sld [smem:[#allocation7 + $0x15]]
        %v676 = vstv %s675
        %v677 = vmul.f32 %v676, %v649
        %679 = vrot.lane.b32.xlu0 %v677, 80
        %v680 = vpop.permute.xlu0 %679
        %v681 = vrot.slane %v680, 1
        %vm682 = vcmask 654336
        %v683 = vsel %vm682, %v680, %v681
        %v685 = vadd.f32 %v674, %v683
        %s686 = sld [smem:[#allocation7 + $0x1c]]
        %s687 = scalar_lea.vmem [#allocation2], 2
        %v688 = vld [vmem:[%s687] ss:$2 sm:$0x7]
        %v689 = vstv %s686
        %v690 = vmul.f32 %v689, %v688
        %692 = vrot.lane.b32.xlu0 %v690, 64
        %v693 = vpop.permute.xlu0 %692
        %v694 = vrot.slane %v693, 7
        %vm695 = vcmask 523264
        %v696 = vsel %vm695, %v694, %v693
        %v698 = vadd.f32 %v685, %v696
        %s699 = sld [smem:[#allocation7 + $0x23]]
        %v700 = vstv %s699
        %v701 = vmul.f32 %v700, %v688
        %703 = vrot.lane.b32.xlu0 %v701, 48
        %v704 = vpop.permute.xlu0 %703
        %v705 = vrot.slane %v704, 7
        %vm706 = vcmask 392192
        %v707 = vsel %vm706, %v705, %v704
        %v709 = vadd.f32 %v698, %v707
        %s710 = sld [smem:[#allocation7 + $0x2a]]
        %v711 = vstv %s710
        %v712 = vmul.f32 %v711, %v688
        %714 = vrot.lane.b32.xlu0 %v712, 32
        %v715 = vpop.permute.xlu0 %714
        %v716 = vrot.slane %v715, 7
        %v717 = vsel %vm272, %v716, %v715
        %v719 = vadd.f32 %v709, %v717
        %s720 = sld [smem:[#allocation7 + $0x31]]
        %s721 = scalar_lea.vmem [#allocation2], 1
        %v722 = vld [vmem:[%s721] ss:$2 sm:$0x7]
        %v723 = vstv %s720
        %v724 = vmul.f32 %v723, %v722
        %v725 = vadd.f32 %v719, %v724
        %s726 = sld [smem:[#allocation7 + $0x38]]
        %v727 = vstv %s726
        %v728 = vmul.f32 %v727, %v722
        %730 = vrot.lane.b32.xlu0 %v728, 112
        %v731 = vpop.permute.xlu0 %730
        %v732 = vrot.slane %v731, 1
        %v733 = vsel %vm660, %v731, %v732
        %v735 = vadd.f32 %v725, %v733
        %s736 = sld [smem:[#allocation7 + $0x3f]]
        %v737 = vstv %s736
        %v738 = vmul.f32 %v737, %v722
        %740 = vrot.lane.b32.xlu0 %v738, 96
        %v741 = vpop.permute.xlu0 %740
        %v742 = vrot.slane %v741, 1
        %v743 = vsel %vm671, %v741, %v742
        %v745 = vadd.f32 %v735, %v743
        %s746 = sld [smem:[#allocation7 + $0x46]]
        %v747 = vstv %s746
        %v748 = vmul.f32 %v747, %v722
        %750 = vrot.lane.b32.xlu0 %v748, 80
        %v751 = vpop.permute.xlu0 %750
        %v752 = vrot.slane %v751, 1
        %v753 = vsel %vm682, %v751, %v752
        %v755 = vadd.f32 %v745, %v753
        %s756 = sld [smem:[#allocation7 + $0x4d]]
        %s757 = scalar_lea.vmem [#allocation2], 3
        %v758 = vld [vmem:[%s757] ss:$2 sm:$0x7]
        %v759 = vstv %s756
        %v760 = vmul.f32 %v759, %v758
        %762 = vrot.lane.b32.xlu0 %v760, 64
        %v763 = vpop.permute.xlu0 %762
        %v764 = vrot.slane %v763, 7
        %v765 = vsel %vm695, %v764, %v763
        %v767 = vadd.f32 %v755, %v765
        %s768 = sld [smem:[#allocation7 + $0x54]]
        %v769 = vstv %s768
        %v770 = vmul.f32 %v769, %v758
        %772 = vrot.lane.b32.xlu0 %v770, 48
        %v773 = vpop.permute.xlu0 %772
        %v774 = vrot.slane %v773, 7
        %v775 = vsel %vm706, %v774, %v773
        %v777 = vadd.f32 %v767, %v775
        %s778 = sld [smem:[#allocation7 + $0x5b]]
        %v779 = vstv %s778
        %v780 = vmul.f32 %v779, %v758
        %782 = vrot.lane.b32.xlu0 %v780, 32
        %v783 = vpop.permute.xlu0 %782
        %v784 = vrot.slane %v783, 7
        %v785 = vsel %vm272, %v784, %v783
        %v787 = vadd.f32 %v777, %v785
        %v789 = vlaneseq
        %v790 = vshrl.u32 %v789, 7
        %v791 = vsub.s32 0, %v790
        %v792 = vrot.slane %v787, %v791
        %v793 = vlaneseq
        %v794 = vshrl.u32 %v793, 7
        %v795 = vsub.s32 1, %v794
        %v796 = vrot.slane %v787, %v795
        %v797 = vlaneseq
        %v798 = vshrl.u32 %v797, 7
        %v799 = vsub.s32 2, %v798
        %v800 = vrot.slane %v787, %v799
        %801 = vrot.lane.b32.xlu0 %v792, 51
        %v802 = vpop.permute.xlu0 %801
        %803 = vrot.lane.b32.xlu0 %v796, 51
        %v804 = vpop.permute.xlu0 %803
        %805 = vrot.lane.b32.xlu0 %v800, 51
        %v806 = vpop.permute.xlu0 %805
        %vm807 = vcmask 416768
        %v808 = vsel %vm807, %v802, %v804
        %v809 = vsel %vm807, %v804, %v806
        %v812 = vmul.f32 %v646, %v808
        %v813 = vmul.f32 %v647, %v809
        %v814 = vadd.f32 %v812, 0.0
        %v815 = vadd.f32 %v813, 0.0
        %v816 = vadd.s32 %v634, 4294967294
        %v817 = vadd.s32 %v635, 4294967294
        %vm818 = vcmp.ge.s32.totalorder %v816, 0
        %vm819 = vcmp.ge.s32.totalorder %v817, 0
        %vm820 = vcmp.lt.s32.totalorder %v816, 16
        %vm821 = vcmp.lt.s32.totalorder %v817, 16
        %vm822 = vmand %vm818, %vm820
        %vm823 = vmand %vm819, %vm821
        %v824 = vsel %vm822, 1, 0
        %v825 = vsel %vm823, 1, 0
        %v826 = vcvt.s32.f32 %v824
        %v827 = vcvt.s32.f32 %v825
        %s828 = sld [smem:[#allocation7 + $0x1]]
        %v829 = vstv %s828
        %v830 = vmul.f32 %v829, %v649
        %v831 = vadd.f32 %v830, 0.0
        %s832 = sld [smem:[#allocation7 + $0x8]]
        %v833 = vstv %s832
        %v834 = vmul.f32 %v833, %v649
        %836 = vrot.lane.b32.xlu0 %v834, 112
        %v837 = vpop.permute.xlu0 %836
        %v838 = vrot.slane %v837, 1
        %v839 = vsel %vm660, %v837, %v838
        %v841 = vadd.f32 %v831, %v839
        %s842 = sld [smem:[#allocation7 + $0xf]]
        %v843 = vstv %s842
        %v844 = vmul.f32 %v843, %v649
        %846 = vrot.lane.b32.xlu0 %v844, 96
        %v847 = vpop.permute.xlu0 %846
        %v848 = vrot.slane %v847, 1
        %v849 = vsel %vm671, %v847, %v848
        %v851 = vadd.f32 %v841, %v849
        %s852 = sld [smem:[#allocation7 + $0x16]]
        %v853 = vstv %s852
        %v854 = vmul.f32 %v853, %v649
        %856 = vrot.lane.b32.xlu0 %v854, 80
        %v857 = vpop.permute.xlu0 %856
        %v858 = vrot.slane %v857, 1
        %v859 = vsel %vm682, %v857, %v858
        %v861 = vadd.f32 %v851, %v859
        %s862 = sld [smem:[#allocation7 + $0x1d]]
        %v863 = vstv %s862
        %v864 = vmul.f32 %v863, %v688
        %866 = vrot.lane.b32.xlu0 %v864, 64
        %v867 = vpop.permute.xlu0 %866
        %v868 = vrot.slane %v867, 7
        %v869 = vsel %vm695, %v868, %v867
        %v871 = vadd.f32 %v861, %v869
        %s872 = sld [smem:[#allocation7 + $0x24]]
        %v873 = vstv %s872
        %v874 = vmul.f32 %v873, %v688
        %876 = vrot.lane.b32.xlu0 %v874, 48
        %v877 = vpop.permute.xlu0 %876
        %v878 = vrot.slane %v877, 7
        %v879 = vsel %vm706, %v878, %v877
        %v881 = vadd.f32 %v871, %v879
        %s882 = sld [smem:[#allocation7 + $0x2b]]
        %v883 = vstv %s882
        %v884 = vmul.f32 %v883, %v688
        %886 = vrot.lane.b32.xlu0 %v884, 32
        %v887 = vpop.permute.xlu0 %886
        %v888 = vrot.slane %v887, 7
        %v889 = vsel %vm272, %v888, %v887
        %v891 = vadd.f32 %v881, %v889
        %s892 = sld [smem:[#allocation7 + $0x32]]
        %v893 = vstv %s892
        %v894 = vmul.f32 %v893, %v722
        %v895 = vadd.f32 %v891, %v894
        %s896 = sld [smem:[#allocation7 + $0x39]]
        %v897 = vstv %s896
        %v898 = vmul.f32 %v897, %v722
        %900 = vrot.lane.b32.xlu0 %v898, 112
        %v901 = vpop.permute.xlu0 %900
        %v902 = vrot.slane %v901, 1
        %v903 = vsel %vm660, %v901, %v902
        %v905 = vadd.f32 %v895, %v903
        %s906 = sld [smem:[#allocation7 + $0x40]]
        %v907 = vstv %s906
        %v908 = vmul.f32 %v907, %v722
        %910 = vrot.lane.b32.xlu0 %v908, 96
        %v911 = vpop.permute.xlu0 %910
        %v912 = vrot.slane %v911, 1
        %v913 = vsel %vm671, %v911, %v912
        %v915 = vadd.f32 %v905, %v913
        %s916 = sld [smem:[#allocation7 + $0x47]]
        %v917 = vstv %s916
        %v918 = vmul.f32 %v917, %v722
        %920 = vrot.lane.b32.xlu0 %v918, 80
        %v921 = vpop.permute.xlu0 %920
        %v922 = vrot.slane %v921, 1
        %v923 = vsel %vm682, %v921, %v922
        %v925 = vadd.f32 %v915, %v923
        %s926 = sld [smem:[#allocation7 + $0x4e]]
        %v927 = vstv %s926
        %v928 = vmul.f32 %v927, %v758
        %930 = vrot.lane.b32.xlu0 %v928, 64
        %v931 = vpop.permute.xlu0 %930
        %v932 = vrot.slane %v931, 7
        %v933 = vsel %vm695, %v932, %v931
        %v935 = vadd.f32 %v925, %v933
        %s936 = sld [smem:[#allocation7 + $0x55]]
        %v937 = vstv %s936
        %v938 = vmul.f32 %v937, %v758
        %940 = vrot.lane.b32.xlu0 %v938, 48
        %v941 = vpop.permute.xlu0 %940
        %v942 = vrot.slane %v941, 7
        %v943 = vsel %vm706, %v942, %v941
        %v945 = vadd.f32 %v935, %v943
        %s946 = sld [smem:[#allocation7 + $0x5c]]
        %v947 = vstv %s946
        %v948 = vmul.f32 %v947, %v758
        %950 = vrot.lane.b32.xlu0 %v948, 32
        %v951 = vpop.permute.xlu0 %950
        %v952 = vrot.slane %v951, 7
        %v953 = vsel %vm272, %v952, %v951
        %v955 = vadd.f32 %v945, %v953
        %v957 = vlaneseq
        %v958 = vshrl.u32 %v957, 7
        %v959 = vsub.s32 0, %v958
        %v960 = vrot.slane %v955, %v959
        %v961 = vlaneseq
        %v962 = vshrl.u32 %v961, 7
        %v963 = vsub.s32 1, %v962
        %v964 = vrot.slane %v955, %v963
        %v965 = vlaneseq
        %v966 = vshrl.u32 %v965, 7
        %v967 = vsub.s32 2, %v966
        %v968 = vrot.slane %v955, %v967
        %969 = vrot.lane.b32.xlu0 %v960, 50
        %v970 = vpop.permute.xlu0 %969
        %971 = vrot.lane.b32.xlu0 %v964, 50
        %v972 = vpop.permute.xlu0 %971
        %973 = vrot.lane.b32.xlu0 %v968, 50
        %v974 = vpop.permute.xlu0 %973
        %vm975 = vcmask 408576
        %v976 = vsel %vm975, %v970, %v972
        %v977 = vsel %vm975, %v972, %v974
        %v980 = vmul.f32 %v826, %v976
        %v981 = vmul.f32 %v827, %v977
        %v982 = vadd.f32 %v814, %v980
        %v983 = vadd.f32 %v815, %v981
        %v984 = vadd.s32 %v634, 4294967295
        %v985 = vadd.s32 %v635, 4294967295
        %vm986 = vcmp.ge.s32.totalorder %v984, 0
        %vm987 = vcmp.ge.s32.totalorder %v985, 0
        %vm988 = vcmp.lt.s32.totalorder %v984, 16
        %vm989 = vcmp.lt.s32.totalorder %v985, 16
        %vm990 = vmand %vm986, %vm988
        %vm991 = vmand %vm987, %vm989
        %v992 = vsel %vm990, 1, 0
        %v993 = vsel %vm991, 1, 0
        %v994 = vcvt.s32.f32 %v992
        %v995 = vcvt.s32.f32 %v993
        %s996 = sld [smem:[#allocation7 + $0x2]]
        %v997 = vstv %s996
        %v998 = vmul.f32 %v997, %v649
        %v999 = vadd.f32 %v998, 0.0
        %s1000 = sld [smem:[#allocation7 + $0x9]]
        %v1001 = vstv %s1000
        %v1002 = vmul.f32 %v1001, %v649
        %1004 = vrot.lane.b32.xlu0 %v1002, 112
        %v1005 = vpop.permute.xlu0 %1004
        %v1006 = vrot.slane %v1005, 1
        %v1007 = vsel %vm660, %v1005, %v1006
        %v1009 = vadd.f32 %v999, %v1007
        %s1010 = sld [smem:[#allocation7 + $0x10]]
        %v1011 = vstv %s1010
        %v1012 = vmul.f32 %v1011, %v649
        %1014 = vrot.lane.b32.xlu0 %v1012, 96
        %v1015 = vpop.permute.xlu0 %1014
        %v1016 = vrot.slane %v1015, 1
        %v1017 = vsel %vm671, %v1015, %v1016
        %v1019 = vadd.f32 %v1009, %v1017
        %s1020 = sld [smem:[#allocation7 + $0x17]]
        %v1021 = vstv %s1020
        %v1022 = vmul.f32 %v1021, %v649
        %1024 = vrot.lane.b32.xlu0 %v1022, 80
        %v1025 = vpop.permute.xlu0 %1024
        %v1026 = vrot.slane %v1025, 1
        %v1027 = vsel %vm682, %v1025, %v1026
        %v1029 = vadd.f32 %v1019, %v1027
        %s1030 = sld [smem:[#allocation7 + $0x1e]]
        %v1031 = vstv %s1030
        %v1032 = vmul.f32 %v1031, %v688
        %1034 = vrot.lane.b32.xlu0 %v1032, 64
        %v1035 = vpop.permute.xlu0 %1034
        %v1036 = vrot.slane %v1035, 7
        %v1037 = vsel %vm695, %v1036, %v1035
        %v1039 = vadd.f32 %v1029, %v1037
        %s1040 = sld [smem:[#allocation7 + $0x25]]
        %v1041 = vstv %s1040
        %v1042 = vmul.f32 %v1041, %v688
        %1044 = vrot.lane.b32.xlu0 %v1042, 48
        %v1045 = vpop.permute.xlu0 %1044
        %v1046 = vrot.slane %v1045, 7
        %v1047 = vsel %vm706, %v1046, %v1045
        %v1049 = vadd.f32 %v1039, %v1047
        %s1050 = sld [smem:[#allocation7 + $0x2c]]
        %v1051 = vstv %s1050
        %v1052 = vmul.f32 %v1051, %v688
        %1054 = vrot.lane.b32.xlu0 %v1052, 32
        %v1055 = vpop.permute.xlu0 %1054
        %v1056 = vrot.slane %v1055, 7
        %v1057 = vsel %vm272, %v1056, %v1055
        %v1059 = vadd.f32 %v1049, %v1057
        %s1060 = sld [smem:[#allocation7 + $0x33]]
        %v1061 = vstv %s1060
        %v1062 = vmul.f32 %v1061, %v722
        %v1063 = vadd.f32 %v1059, %v1062
        %s1064 = sld [smem:[#allocation7 + $0x3a]]
        %v1065 = vstv %s1064
        %v1066 = vmul.f32 %v1065, %v722
        %1068 = vrot.lane.b32.xlu0 %v1066, 112
        %v1069 = vpop.permute.xlu0 %1068
        %v1070 = vrot.slane %v1069, 1
        %v1071 = vsel %vm660, %v1069, %v1070
        %v1073 = vadd.f32 %v1063, %v1071
        %s1074 = sld [smem:[#allocation7 + $0x41]]
        %v1075 = vstv %s1074
        %v1076 = vmul.f32 %v1075, %v722
        %1078 = vrot.lane.b32.xlu0 %v1076, 96
        %v1079 = vpop.permute.xlu0 %1078
        %v1080 = vrot.slane %v1079, 1
        %v1081 = vsel %vm671, %v1079, %v1080
        %v1083 = vadd.f32 %v1073, %v1081
        %s1084 = sld [smem:[#allocation7 + $0x48]]
        %v1085 = vstv %s1084
        %v1086 = vmul.f32 %v1085, %v722
        %1088 = vrot.lane.b32.xlu0 %v1086, 80
        %v1089 = vpop.permute.xlu0 %1088
        %v1090 = vrot.slane %v1089, 1
        %v1091 = vsel %vm682, %v1089, %v1090
        %v1093 = vadd.f32 %v1083, %v1091
        %s1094 = sld [smem:[#allocation7 + $0x4f]]
        %v1095 = vstv %s1094
        %v1096 = vmul.f32 %v1095, %v758
        %1098 = vrot.lane.b32.xlu0 %v1096, 64
        %v1099 = vpop.permute.xlu0 %1098
        %v1100 = vrot.slane %v1099, 7
        %v1101 = vsel %vm695, %v1100, %v1099
        %v1103 = vadd.f32 %v1093, %v1101
        %s1104 = sld [smem:[#allocation7 + $0x56]]
        %v1105 = vstv %s1104
        %v1106 = vmul.f32 %v1105, %v758
        %1108 = vrot.lane.b32.xlu0 %v1106, 48
        %v1109 = vpop.permute.xlu0 %1108
        %v1110 = vrot.slane %v1109, 7
        %v1111 = vsel %vm706, %v1110, %v1109
        %v1113 = vadd.f32 %v1103, %v1111
        %s1114 = sld [smem:[#allocation7 + $0x5d]]
        %v1115 = vstv %s1114
        %v1116 = vmul.f32 %v1115, %v758
        %1118 = vrot.lane.b32.xlu0 %v1116, 32
        %v1119 = vpop.permute.xlu0 %1118
        %v1120 = vrot.slane %v1119, 7
        %v1121 = vsel %vm272, %v1120, %v1119
        %v1123 = vadd.f32 %v1113, %v1121
        %v1125 = vlaneseq
        %v1126 = vshrl.u32 %v1125, 7
        %v1127 = vsub.s32 0, %v1126
        %v1128 = vrot.slane %v1123, %v1127
        %v1129 = vlaneseq
        %v1130 = vshrl.u32 %v1129, 7
        %v1131 = vsub.s32 1, %v1130
        %v1132 = vrot.slane %v1123, %v1131
        %v1133 = vlaneseq
        %v1134 = vshrl.u32 %v1133, 7
        %v1135 = vsub.s32 2, %v1134
        %v1136 = vrot.slane %v1123, %v1135
        %1137 = vrot.lane.b32.xlu0 %v1128, 49
        %v1138 = vpop.permute.xlu0 %1137
        %1139 = vrot.lane.b32.xlu0 %v1132, 49
        %v1140 = vpop.permute.xlu0 %1139
        %1141 = vrot.lane.b32.xlu0 %v1136, 49
        %v1142 = vpop.permute.xlu0 %1141
        %vm1143 = vcmask 400384
        %v1144 = vsel %vm1143, %v1138, %v1140
        %v1145 = vsel %vm1143, %v1140, %v1142
        %v1148 = vmul.f32 %v994, %v1144
        %v1149 = vmul.f32 %v995, %v1145
        %v1150 = vadd.f32 %v982, %v1148
        %v1151 = vadd.f32 %v983, %v1149
        %vm1152 = vcmp.ge.s32.totalorder %v634, 0
        %vm1153 = vcmp.ge.s32.totalorder %v635, 0
        %vm1154 = vcmp.lt.s32.totalorder %v634, 16
        %vm1155 = vcmp.lt.s32.totalorder %v635, 16
        %vm1156 = vmand %vm1152, %vm1154
        %vm1157 = vmand %vm1153, %vm1155
        %v1158 = vsel %vm1156, 1, 0
        %v1159 = vsel %vm1157, 1, 0
        %v1160 = vcvt.s32.f32 %v1158
        %v1161 = vcvt.s32.f32 %v1159
        %s1162 = sld [smem:[#allocation7 + $0x3]]
        %v1163 = vstv %s1162
        %v1164 = vmul.f32 %v1163, %v649
        %v1165 = vadd.f32 %v1164, 0.0
        %s1166 = sld [smem:[#allocation7 + $0xa]]
        %v1167 = vstv %s1166
        %v1168 = vmul.f32 %v1167, %v649
        %1170 = vrot.lane.b32.xlu0 %v1168, 112
        %v1171 = vpop.permute.xlu0 %1170
        %v1172 = vrot.slane %v1171, 1
        %v1173 = vsel %vm660, %v1171, %v1172
        %v1175 = vadd.f32 %v1165, %v1173
        %s1176 = sld [smem:[#allocation7 + $0x11]]
        %v1177 = vstv %s1176
        %v1178 = vmul.f32 %v1177, %v649
        %1180 = vrot.lane.b32.xlu0 %v1178, 96
        %v1181 = vpop.permute.xlu0 %1180
        %v1182 = vrot.slane %v1181, 1
        %v1183 = vsel %vm671, %v1181, %v1182
        %v1185 = vadd.f32 %v1175, %v1183
        %s1186 = sld [smem:[#allocation7 + $0x18]]
        %v1187 = vld [vmem:[%s567] ss:$2 sm:$0x3]
        %v1188 = vstv %s1186
        %v1189 = vmul.f32 %v1188, %v1187
        %1191 = vrot.lane.b32.xlu0 %v1189, 80
        %v1192 = vpop.permute.xlu0 %1191
        %v1193 = vrot.slane %v1192, 7
        %v1194 = vsel %vm682, %v1193, %v1192
        %v1196 = vadd.f32 %v1185, %v1194
        %s1197 = sld [smem:[#allocation7 + $0x1f]]
        %v1198 = vstv %s1197
        %v1199 = vmul.f32 %v1198, %v688
        %1201 = vrot.lane.b32.xlu0 %v1199, 64
        %v1202 = vpop.permute.xlu0 %1201
        %v1203 = vrot.slane %v1202, 7
        %v1204 = vsel %vm695, %v1203, %v1202
        %v1206 = vadd.f32 %v1196, %v1204
        %s1207 = sld [smem:[#allocation7 + $0x26]]
        %v1208 = vstv %s1207
        %v1209 = vmul.f32 %v1208, %v688
        %1211 = vrot.lane.b32.xlu0 %v1209, 48
        %v1212 = vpop.permute.xlu0 %1211
        %v1213 = vrot.slane %v1212, 7
        %v1214 = vsel %vm706, %v1213, %v1212
        %v1216 = vadd.f32 %v1206, %v1214
        %s1217 = sld [smem:[#allocation7 + $0x2d]]
        %v1218 = vstv %s1217
        %v1219 = vmul.f32 %v1218, %v688
        %1221 = vrot.lane.b32.xlu0 %v1219, 32
        %v1222 = vpop.permute.xlu0 %1221
        %v1223 = vrot.slane %v1222, 7
        %v1224 = vsel %vm272, %v1223, %v1222
        %v1226 = vadd.f32 %v1216, %v1224
        %s1227 = sld [smem:[#allocation7 + $0x34]]
        %v1228 = vstv %s1227
        %v1229 = vmul.f32 %v1228, %v722
        %v1230 = vadd.f32 %v1226, %v1229
        %s1231 = sld [smem:[#allocation7 + $0x3b]]
        %v1232 = vstv %s1231
        %v1233 = vmul.f32 %v1232, %v722
        %1235 = vrot.lane.b32.xlu0 %v1233, 112
        %v1236 = vpop.permute.xlu0 %1235
        %v1237 = vrot.slane %v1236, 1
        %v1238 = vsel %vm660, %v1236, %v1237
        %v1240 = vadd.f32 %v1230, %v1238
        %s1241 = sld [smem:[#allocation7 + $0x42]]
        %v1242 = vstv %s1241
        %v1243 = vmul.f32 %v1242, %v722
        %1245 = vrot.lane.b32.xlu0 %v1243, 96
        %v1246 = vpop.permute.xlu0 %1245
        %v1247 = vrot.slane %v1246, 1
        %v1248 = vsel %vm671, %v1246, %v1247
        %v1250 = vadd.f32 %v1240, %v1248
        %s1251 = sld [smem:[#allocation7 + $0x49]]
        %v1252 = vld [vmem:[%s607] ss:$2 sm:$0x3]
        %v1253 = vstv %s1251
        %v1254 = vmul.f32 %v1253, %v1252
        %1256 = vrot.lane.b32.xlu0 %v1254, 80
        %v1257 = vpop.permute.xlu0 %1256
        %v1258 = vrot.slane %v1257, 7
        %v1259 = vsel %vm682, %v1258, %v1257
        %v1261 = vadd.f32 %v1250, %v1259
        %s1262 = sld [smem:[#allocation7 + $0x50]]
        %v1263 = vstv %s1262
        %v1264 = vmul.f32 %v1263, %v758
        %1266 = vrot.lane.b32.xlu0 %v1264, 64
        %v1267 = vpop.permute.xlu0 %1266
        %v1268 = vrot.slane %v1267, 7
        %v1269 = vsel %vm695, %v1268, %v1267
        %v1271 = vadd.f32 %v1261, %v1269
        %s1272 = sld [smem:[#allocation7 + $0x57]]
        %v1273 = vstv %s1272
        %v1274 = vmul.f32 %v1273, %v758
        %1276 = vrot.lane.b32.xlu0 %v1274, 48
        %v1277 = vpop.permute.xlu0 %1276
        %v1278 = vrot.slane %v1277, 7
        %v1279 = vsel %vm706, %v1278, %v1277
        %v1281 = vadd.f32 %v1271, %v1279
        %s1282 = sld [smem:[#allocation7 + $0x5e]]
        %v1283 = vstv %s1282
        %v1284 = vmul.f32 %v1283, %v758
        %1286 = vrot.lane.b32.xlu0 %v1284, 32
        %v1287 = vpop.permute.xlu0 %1286
        %v1288 = vrot.slane %v1287, 7
        %v1289 = vsel %vm272, %v1288, %v1287
        %v1291 = vadd.f32 %v1281, %v1289
        %v1293 = vlaneseq
        %v1294 = vshrl.u32 %v1293, 7
        %v1295 = vsub.s32 0, %v1294
        %v1296 = vrot.slane %v1291, %v1295
        %v1297 = vlaneseq
        %v1298 = vshrl.u32 %v1297, 7
        %v1299 = vsub.s32 1, %v1298
        %v1300 = vrot.slane %v1291, %v1299
        %v1301 = vlaneseq
        %v1302 = vshrl.u32 %v1301, 7
        %v1303 = vsub.s32 2, %v1302
        %v1304 = vrot.slane %v1291, %v1303
        %1305 = vrot.lane.b32.xlu0 %v1296, 48
        %v1306 = vpop.permute.xlu0 %1305
        %1307 = vrot.lane.b32.xlu0 %v1300, 48
        %v1308 = vpop.permute.xlu0 %1307
        %1309 = vrot.lane.b32.xlu0 %v1304, 48
        %v1310 = vpop.permute.xlu0 %1309
        %v1311 = vsel %vm706, %v1306, %v1308
        %v1312 = vsel %vm706, %v1308, %v1310
        %v1315 = vmul.f32 %v1160, %v1311
        %v1316 = vmul.f32 %v1161, %v1312
        %v1317 = vadd.f32 %v1150, %v1315
        %v1318 = vadd.f32 %v1151, %v1316
        %v1319 = vadd.s32 %v634, 1
        %v1320 = vadd.s32 %v635, 1
        %vm1321 = vcmp.ge.s32.totalorder %v1319, 0
        %vm1322 = vcmp.ge.s32.totalorder %v1320, 0
        %vm1323 = vcmp.lt.s32.totalorder %v1319, 16
        %vm1324 = vcmp.lt.s32.totalorder %v1320, 16
        %vm1325 = vmand %vm1321, %vm1323
        %vm1326 = vmand %vm1322, %vm1324
        %v1327 = vsel %vm1325, 1, 0
        %v1328 = vsel %vm1326, 1, 0
        %v1329 = vcvt.s32.f32 %v1327
        %v1330 = vcvt.s32.f32 %v1328
        %s1331 = sld [smem:[#allocation7 + $0x4]]
        %v1332 = vstv %s1331
        %v1333 = vmul.f32 %v1332, %v649
        %v1334 = vadd.f32 %v1333, 0.0
        %s1335 = sld [smem:[#allocation7 + $0xb]]
        %v1336 = vstv %s1335
        %v1337 = vmul.f32 %v1336, %v649
        %1339 = vrot.lane.b32.xlu0 %v1337, 112
        %v1340 = vpop.permute.xlu0 %1339
        %v1341 = vrot.slane %v1340, 1
        %v1342 = vsel %vm660, %v1340, %v1341
        %v1344 = vadd.f32 %v1334, %v1342
        %s1345 = sld [smem:[#allocation7 + $0x12]]
        %v1346 = vstv %s1345
        %v1347 = vmul.f32 %v1346, %v649
        %1349 = vrot.lane.b32.xlu0 %v1347, 96
        %v1350 = vpop.permute.xlu0 %1349
        %v1351 = vrot.slane %v1350, 1
        %v1352 = vsel %vm671, %v1350, %v1351
        %v1354 = vadd.f32 %v1344, %v1352
        %s1355 = sld [smem:[#allocation7 + $0x19]]
        %v1356 = vstv %s1355
        %v1357 = vmul.f32 %v1356, %v688
        %1359 = vrot.lane.b32.xlu0 %v1357, 80
        %v1360 = vpop.permute.xlu0 %1359
        %v1361 = vrot.slane %v1360, 7
        %v1362 = vsel %vm682, %v1361, %v1360
        %v1364 = vadd.f32 %v1354, %v1362
        %s1365 = sld [smem:[#allocation7 + $0x20]]
        %v1366 = vstv %s1365
        %v1367 = vmul.f32 %v1366, %v688
        %1369 = vrot.lane.b32.xlu0 %v1367, 64
        %v1370 = vpop.permute.xlu0 %1369
        %v1371 = vrot.slane %v1370, 7
        %v1372 = vsel %vm695, %v1371, %v1370
        %v1374 = vadd.f32 %v1364, %v1372
        %s1375 = sld [smem:[#allocation7 + $0x27]]
        %v1376 = vstv %s1375
        %v1377 = vmul.f32 %v1376, %v688
        %1379 = vrot.lane.b32.xlu0 %v1377, 48
        %v1380 = vpop.permute.xlu0 %1379
        %v1381 = vrot.slane %v1380, 7
        %v1382 = vsel %vm706, %v1381, %v1380
        %v1384 = vadd.f32 %v1374, %v1382
        %s1385 = sld [smem:[#allocation7 + $0x2e]]
        %v1386 = vstv %s1385
        %v1387 = vmul.f32 %v1386, %v688
        %1389 = vrot.lane.b32.xlu0 %v1387, 32
        %v1390 = vpop.permute.xlu0 %1389
        %v1391 = vrot.slane %v1390, 7
        %v1392 = vsel %vm272, %v1391, %v1390
        %v1394 = vadd.f32 %v1384, %v1392
        %s1395 = sld [smem:[#allocation7 + $0x35]]
        %v1396 = vstv %s1395
        %v1397 = vmul.f32 %v1396, %v722
        %v1398 = vadd.f32 %v1394, %v1397
        %s1399 = sld [smem:[#allocation7 + $0x3c]]
        %v1400 = vstv %s1399
        %v1401 = vmul.f32 %v1400, %v722
        %1403 = vrot.lane.b32.xlu0 %v1401, 112
        %v1404 = vpop.permute.xlu0 %1403
        %v1405 = vrot.slane %v1404, 1
        %v1406 = vsel %vm660, %v1404, %v1405
        %v1408 = vadd.f32 %v1398, %v1406
        %s1409 = sld [smem:[#allocation7 + $0x43]]
        %v1410 = vstv %s1409
        %v1411 = vmul.f32 %v1410, %v722
        %1413 = vrot.lane.b32.xlu0 %v1411, 96
        %v1414 = vpop.permute.xlu0 %1413
        %v1415 = vrot.slane %v1414, 1
        %v1416 = vsel %vm671, %v1414, %v1415
        %v1418 = vadd.f32 %v1408, %v1416
        %s1419 = sld [smem:[#allocation7 + $0x4a]]
        %v1420 = vstv %s1419
        %v1421 = vmul.f32 %v1420, %v758
        %1423 = vrot.lane.b32.xlu0 %v1421, 80
        %v1424 = vpop.permute.xlu0 %1423
        %v1425 = vrot.slane %v1424, 7
        %v1426 = vsel %vm682, %v1425, %v1424
        %v1428 = vadd.f32 %v1418, %v1426
        %s1429 = sld [smem:[#allocation7 + $0x51]]
        %v1430 = vstv %s1429
        %v1431 = vmul.f32 %v1430, %v758
        %1433 = vrot.lane.b32.xlu0 %v1431, 64
        %v1434 = vpop.permute.xlu0 %1433
        %v1435 = vrot.slane %v1434, 7
        %v1436 = vsel %vm695, %v1435, %v1434
        %v1438 = vadd.f32 %v1428, %v1436
        %s1439 = sld [smem:[#allocation7 + $0x58]]
        %v1440 = vstv %s1439
        %v1441 = vmul.f32 %v1440, %v758
        %1443 = vrot.lane.b32.xlu0 %v1441, 48
        %v1444 = vpop.permute.xlu0 %1443
        %v1445 = vrot.slane %v1444, 7
        %v1446 = vsel %vm706, %v1445, %v1444
        %v1448 = vadd.f32 %v1438, %v1446
        %s1449 = sld [smem:[#allocation7 + $0x5f]]
        %v1450 = vstv %s1449
        %v1451 = vmul.f32 %v1450, %v758
        %1453 = vrot.lane.b32.xlu0 %v1451, 32
        %v1454 = vpop.permute.xlu0 %1453
        %v1455 = vrot.slane %v1454, 7
        %v1456 = vsel %vm272, %v1455, %v1454
        %v1458 = vadd.f32 %v1448, %v1456
        %v1460 = vlaneseq
        %v1461 = vshrl.u32 %v1460, 7
        %v1462 = vsub.s32 0, %v1461
        %v1463 = vrot.slane %v1458, %v1462
        %v1464 = vlaneseq
        %v1465 = vshrl.u32 %v1464, 7
        %v1466 = vsub.s32 1, %v1465
        %v1467 = vrot.slane %v1458, %v1466
        %v1468 = vlaneseq
        %v1469 = vshrl.u32 %v1468, 7
        %v1470 = vsub.s32 2, %v1469
        %v1471 = vrot.slane %v1458, %v1470
        %1472 = vrot.lane.b32.xlu0 %v1463, 47
        %v1473 = vpop.permute.xlu0 %1472
        %1474 = vrot.lane.b32.xlu0 %v1467, 47
        %v1475 = vpop.permute.xlu0 %1474
        %1476 = vrot.lane.b32.xlu0 %v1471, 47
        %v1477 = vpop.permute.xlu0 %1476
        %vm1478 = vcmask 384000
        %v1479 = vsel %vm1478, %v1473, %v1475
        %v1480 = vsel %vm1478, %v1475, %v1477
        %v1483 = vmul.f32 %v1329, %v1479
        %v1484 = vmul.f32 %v1330, %v1480
        %v1485 = vadd.f32 %v1317, %v1483
        %v1486 = vadd.f32 %v1318, %v1484
        %v1487 = vadd.s32 %v634, 2
        %v1488 = vadd.s32 %v635, 2
        %vm1489 = vcmp.ge.s32.totalorder %v1487, 0
        %vm1490 = vcmp.ge.s32.totalorder %v1488, 0
        %vm1491 = vcmp.lt.s32.totalorder %v1487, 16
        %vm1492 = vcmp.lt.s32.totalorder %v1488, 16
        %vm1493 = vmand %vm1489, %vm1491
        %vm1494 = vmand %vm1490, %vm1492
        %v1495 = vsel %vm1493, 1, 0
        %v1496 = vsel %vm1494, 1, 0
        %v1497 = vcvt.s32.f32 %v1495
        %v1498 = vcvt.s32.f32 %v1496
        %s1499 = sld [smem:[#allocation7 + $0x5]]
        %v1500 = vstv %s1499
        %v1501 = vmul.f32 %v1500, %v649
        %v1502 = vadd.f32 %v1501, 0.0
        %s1503 = sld [smem:[#allocation7 + $0xc]]
        %v1504 = vstv %s1503
        %v1505 = vmul.f32 %v1504, %v649
        %1507 = vrot.lane.b32.xlu0 %v1505, 112
        %v1508 = vpop.permute.xlu0 %1507
        %v1509 = vrot.slane %v1508, 1
        %v1510 = vsel %vm660, %v1508, %v1509
        %v1512 = vadd.f32 %v1502, %v1510
        %s1513 = sld [smem:[#allocation7 + $0x13]]
        %v1514 = vstv %s1513
        %v1515 = vmul.f32 %v1514, %v649
        %1517 = vrot.lane.b32.xlu0 %v1515, 96
        %v1518 = vpop.permute.xlu0 %1517
        %v1519 = vrot.slane %v1518, 1
        %v1520 = vsel %vm671, %v1518, %v1519
        %v1522 = vadd.f32 %v1512, %v1520
        %s1523 = sld [smem:[#allocation7 + $0x1a]]
        %v1524 = vstv %s1523
        %v1525 = vmul.f32 %v1524, %v688
        %1527 = vrot.lane.b32.xlu0 %v1525, 80
        %v1528 = vpop.permute.xlu0 %1527
        %v1529 = vrot.slane %v1528, 7
        %v1530 = vsel %vm682, %v1529, %v1528
        %v1532 = vadd.f32 %v1522, %v1530
        %s1533 = sld [smem:[#allocation7 + $0x21]]
        %v1534 = vstv %s1533
        %v1535 = vmul.f32 %v1534, %v688
        %1537 = vrot.lane.b32.xlu0 %v1535, 64
        %v1538 = vpop.permute.xlu0 %1537
        %v1539 = vrot.slane %v1538, 7
        %v1540 = vsel %vm695, %v1539, %v1538
        %v1542 = vadd.f32 %v1532, %v1540
        %s1543 = sld [smem:[#allocation7 + $0x28]]
        %v1544 = vstv %s1543
        %v1545 = vmul.f32 %v1544, %v688
        %1547 = vrot.lane.b32.xlu0 %v1545, 48
        %v1548 = vpop.permute.xlu0 %1547
        %v1549 = vrot.slane %v1548, 7
        %v1550 = vsel %vm706, %v1549, %v1548
        %v1552 = vadd.f32 %v1542, %v1550
        %s1553 = sld [smem:[#allocation7 + $0x2f]]
        %v1554 = vstv %s1553
        %v1555 = vmul.f32 %v1554, %v688
        %1557 = vrot.lane.b32.xlu0 %v1555, 32
        %v1558 = vpop.permute.xlu0 %1557
        %v1559 = vrot.slane %v1558, 7
        %v1560 = vsel %vm272, %v1559, %v1558
        %v1562 = vadd.f32 %v1552, %v1560
        %s1563 = sld [smem:[#allocation7 + $0x36]]
        %v1564 = vstv %s1563
        %v1565 = vmul.f32 %v1564, %v722
        %v1566 = vadd.f32 %v1562, %v1565
        %s1567 = sld [smem:[#allocation7 + $0x3d]]
        %v1568 = vstv %s1567
        %v1569 = vmul.f32 %v1568, %v722
        %1571 = vrot.lane.b32.xlu0 %v1569, 112
        %v1572 = vpop.permute.xlu0 %1571
        %v1573 = vrot.slane %v1572, 1
        %v1574 = vsel %vm660, %v1572, %v1573
        %v1576 = vadd.f32 %v1566, %v1574
        %s1577 = sld [smem:[#allocation7 + $0x44]]
        %v1578 = vstv %s1577
        %v1579 = vmul.f32 %v1578, %v722
        %1581 = vrot.lane.b32.xlu0 %v1579, 96
        %v1582 = vpop.permute.xlu0 %1581
        %v1583 = vrot.slane %v1582, 1
        %v1584 = vsel %vm671, %v1582, %v1583
        %v1586 = vadd.f32 %v1576, %v1584
        %s1587 = sld [smem:[#allocation7 + $0x4b]]
        %v1588 = vstv %s1587
        %v1589 = vmul.f32 %v1588, %v758
        %1591 = vrot.lane.b32.xlu0 %v1589, 80
        %v1592 = vpop.permute.xlu0 %1591
        %v1593 = vrot.slane %v1592, 7
        %v1594 = vsel %vm682, %v1593, %v1592
        %v1596 = vadd.f32 %v1586, %v1594
        %s1597 = sld [smem:[#allocation7 + $0x52]]
        %v1598 = vstv %s1597
        %v1599 = vmul.f32 %v1598, %v758
        %1601 = vrot.lane.b32.xlu0 %v1599, 64
        %v1602 = vpop.permute.xlu0 %1601
        %v1603 = vrot.slane %v1602, 7
        %v1604 = vsel %vm695, %v1603, %v1602
        %v1606 = vadd.f32 %v1596, %v1604
        %s1607 = sld [smem:[#allocation7 + $0x59]]
        %v1608 = vstv %s1607
        %v1609 = vmul.f32 %v1608, %v758
        %1611 = vrot.lane.b32.xlu0 %v1609, 48
        %v1612 = vpop.permute.xlu0 %1611
        %v1613 = vrot.slane %v1612, 7
        %v1614 = vsel %vm706, %v1613, %v1612
        %v1616 = vadd.f32 %v1606, %v1614
        %s1617 = sld [smem:[#allocation7 + $0x60]]
        %v1618 = vstv %s1617
        %v1619 = vmul.f32 %v1618, %v758
        %1621 = vrot.lane.b32.xlu0 %v1619, 32
        %v1622 = vpop.permute.xlu0 %1621
        %v1623 = vrot.slane %v1622, 7
        %v1624 = vsel %vm272, %v1623, %v1622
        %v1626 = vadd.f32 %v1616, %v1624
        %v1628 = vlaneseq
        %v1629 = vshrl.u32 %v1628, 7
        %v1630 = vsub.s32 0, %v1629
        %v1631 = vrot.slane %v1626, %v1630
        %v1632 = vlaneseq
        %v1633 = vshrl.u32 %v1632, 7
        %v1634 = vsub.s32 1, %v1633
        %v1635 = vrot.slane %v1626, %v1634
        %v1636 = vlaneseq
        %v1637 = vshrl.u32 %v1636, 7
        %v1638 = vsub.s32 2, %v1637
        %v1639 = vrot.slane %v1626, %v1638
        %1640 = vrot.lane.b32.xlu0 %v1631, 46
        %v1641 = vpop.permute.xlu0 %1640
        %1642 = vrot.lane.b32.xlu0 %v1635, 46
        %v1643 = vpop.permute.xlu0 %1642
        %1644 = vrot.lane.b32.xlu0 %v1639, 46
        %v1645 = vpop.permute.xlu0 %1644
        %vm1646 = vcmask 375808
        %v1647 = vsel %vm1646, %v1641, %v1643
        %v1648 = vsel %vm1646, %v1643, %v1645
        %v1651 = vmul.f32 %v1497, %v1647
        %v1652 = vmul.f32 %v1498, %v1648
        %v1653 = vadd.f32 %v1485, %v1651
        %v1654 = vadd.f32 %v1486, %v1652
        %v1655 = vadd.s32 %v634, 3
        %v1656 = vadd.s32 %v635, 3
        %vm1657 = vcmp.ge.s32.totalorder %v1655, 0
        %vm1658 = vcmp.ge.s32.totalorder %v1656, 0
        %vm1659 = vcmp.lt.s32.totalorder %v1655, 16
        %vm1660 = vcmp.lt.s32.totalorder %v1656, 16
        %vm1661 = vmand %vm1657, %vm1659
        %vm1662 = vmand %vm1658, %vm1660
        %v1663 = vsel %vm1661, 1, 0
        %v1664 = vsel %vm1662, 1, 0
        %v1665 = vcvt.s32.f32 %v1663
        %v1666 = vcvt.s32.f32 %v1664
        %s1667 = sld [smem:[#allocation7 + $0x6]]
        %v1668 = vstv %s1667
        %v1669 = vmul.f32 %v1668, %v649
        %v1670 = vadd.f32 %v1669, 0.0
        %s1671 = sld [smem:[#allocation7 + $0xd]]
        %v1672 = vstv %s1671
        %v1673 = vmul.f32 %v1672, %v649
        %1675 = vrot.lane.b32.xlu0 %v1673, 112
        %v1676 = vpop.permute.xlu0 %1675
        %v1677 = vrot.slane %v1676, 1
        %v1678 = vsel %vm660, %v1676, %v1677
        %v1680 = vadd.f32 %v1670, %v1678
        %s1681 = sld [smem:[#allocation7 + $0x14]]
        %v1682 = vstv %s1681
        %v1683 = vmul.f32 %v1682, %v649
        %1685 = vrot.lane.b32.xlu0 %v1683, 96
        %v1686 = vpop.permute.xlu0 %1685
        %v1687 = vrot.slane %v1686, 1
        %v1688 = vsel %vm671, %v1686, %v1687
        %v1690 = vadd.f32 %v1680, %v1688
        %s1691 = sld [smem:[#allocation7 + $0x1b]]
        %v1692 = vstv %s1691
        %v1693 = vmul.f32 %v1692, %v688
        %1695 = vrot.lane.b32.xlu0 %v1693, 80
        %v1696 = vpop.permute.xlu0 %1695
        %v1697 = vrot.slane %v1696, 7
        %v1698 = vsel %vm682, %v1697, %v1696
        %v1700 = vadd.f32 %v1690, %v1698
        %s1701 = sld [smem:[#allocation7 + $0x22]]
        %v1702 = vstv %s1701
        %v1703 = vmul.f32 %v1702, %v688
        %1705 = vrot.lane.b32.xlu0 %v1703, 64
        %v1706 = vpop.permute.xlu0 %1705
        %v1707 = vrot.slane %v1706, 7
        %v1708 = vsel %vm695, %v1707, %v1706
        %v1710 = vadd.f32 %v1700, %v1708
        %s1711 = sld [smem:[#allocation7 + $0x29]]
        %v1712 = vstv %s1711
        %v1713 = vmul.f32 %v1712, %v688
        %1715 = vrot.lane.b32.xlu0 %v1713, 48
        %v1716 = vpop.permute.xlu0 %1715
        %v1717 = vrot.slane %v1716, 7
        %v1718 = vsel %vm706, %v1717, %v1716
        %v1720 = vadd.f32 %v1710, %v1718
        %s1721 = sld [smem:[#allocation7 + $0x30]]
        %v1722 = vstv %s1721
        %v1723 = vmul.f32 %v1722, %v688
        %1725 = vrot.lane.b32.xlu0 %v1723, 32
        %v1726 = vpop.permute.xlu0 %1725
        %v1727 = vrot.slane %v1726, 7
        %v1728 = vsel %vm272, %v1727, %v1726
        %v1730 = vadd.f32 %v1720, %v1728
        %s1731 = sld [smem:[#allocation7 + $0x37]]
        %v1732 = vstv %s1731
        %v1733 = vmul.f32 %v1732, %v722
        %v1734 = vadd.f32 %v1730, %v1733
        %s1735 = sld [smem:[#allocation7 + $0x3e]]
        %v1736 = vstv %s1735
        %v1737 = vmul.f32 %v1736, %v722
        %1739 = vrot.lane.b32.xlu0 %v1737, 112
        %v1740 = vpop.permute.xlu0 %1739
        %v1741 = vrot.slane %v1740, 1
        %v1742 = vsel %vm660, %v1740, %v1741
        %v1744 = vadd.f32 %v1734, %v1742
        %s1745 = sld [smem:[#allocation7 + $0x45]]
        %v1746 = vstv %s1745
        %v1747 = vmul.f32 %v1746, %v722
        %1749 = vrot.lane.b32.xlu0 %v1747, 96
        %v1750 = vpop.permute.xlu0 %1749
        %v1751 = vrot.slane %v1750, 1
        %v1752 = vsel %vm671, %v1750, %v1751
        %v1754 = vadd.f32 %v1744, %v1752
        %s1755 = sld [smem:[#allocation7 + $0x4c]]
        %v1756 = vstv %s1755
        %v1757 = vmul.f32 %v1756, %v758
        %1759 = vrot.lane.b32.xlu0 %v1757, 80
        %v1760 = vpop.permute.xlu0 %1759
        %v1761 = vrot.slane %v1760, 7
        %v1762 = vsel %vm682, %v1761, %v1760
        %v1764 = vadd.f32 %v1754, %v1762
        %s1765 = sld [smem:[#allocation7 + $0x53]]
        %v1766 = vstv %s1765
        %v1767 = vmul.f32 %v1766, %v758
        %1769 = vrot.lane.b32.xlu0 %v1767, 64
        %v1770 = vpop.permute.xlu0 %1769
        %v1771 = vrot.slane %v1770, 7
        %v1772 = vsel %vm695, %v1771, %v1770
        %v1774 = vadd.f32 %v1764, %v1772
        %s1775 = sld [smem:[#allocation7 + $0x5a]]
        %v1776 = vstv %s1775
        %v1777 = vmul.f32 %v1776, %v758
        %1779 = vrot.lane.b32.xlu0 %v1777, 48
        %v1780 = vpop.permute.xlu0 %1779
        %v1781 = vrot.slane %v1780, 7
        %v1782 = vsel %vm706, %v1781, %v1780
        %v1784 = vadd.f32 %v1774, %v1782
        %s1785 = sld [smem:[#allocation7 + $0x61]]
        %v1786 = vstv %s1785
        %v1787 = vmul.f32 %v1786, %v758
        %1789 = vrot.lane.b32.xlu0 %v1787, 32
        %v1790 = vpop.permute.xlu0 %1789
        %v1791 = vrot.slane %v1790, 7
        %v1792 = vsel %vm272, %v1791, %v1790
        %v1794 = vadd.f32 %v1784, %v1792
        %v1796 = vlaneseq
        %v1797 = vshrl.u32 %v1796, 7
        %v1798 = vsub.s32 0, %v1797
        %v1799 = vrot.slane %v1794, %v1798
        %v1800 = vlaneseq
        %v1801 = vshrl.u32 %v1800, 7
        %v1802 = vsub.s32 1, %v1801
        %v1803 = vrot.slane %v1794, %v1802
        %v1804 = vlaneseq
        %v1805 = vshrl.u32 %v1804, 7
        %v1806 = vsub.s32 2, %v1805
        %v1807 = vrot.slane %v1794, %v1806
        %1808 = vrot.lane.b32.xlu0 %v1799, 45
        %v1809 = vpop.permute.xlu0 %1808
        %1810 = vrot.lane.b32.xlu0 %v1803, 45
        %v1811 = vpop.permute.xlu0 %1810
        %1812 = vrot.lane.b32.xlu0 %v1807, 45
        %v1813 = vpop.permute.xlu0 %1812
        %vm1814 = vcmask 367616
        %v1815 = vsel %vm1814, %v1809, %v1811
        %v1816 = vsel %vm1814, %v1811, %v1813
        %v1819 = vmul.f32 %v1665, %v1815
        %v1820 = vmul.f32 %v1666, %v1816
        %v1821 = vadd.f32 %v1653, %v1819
        %v1822 = vadd.f32 %v1654, %v1820
        %v1823 = vxor.u32 %v1821, 2147483648
        %v1824 = vxor.u32 %v1822, 2147483648
        %v1825 = vmul.f32 %v1823, 1.442695
        %v1826 = vpow.pop %v1825
        %v1827 = vmul.f32 %v1824, 1.442695
        %v1828 = vpow.pop %v1827
        %v1829 = vadd.f32 %v1826, 1.0
        %v1830 = vadd.f32 %v1828, 1.0
        %v1831 = vrcp.pop %v1829
        %v1832 = vmul.f32 1.0, %v1831
        %v1833 = vrcp.pop %v1830
        %v1834 = vmul.f32 1.0, %v1833
        %v1835 = vlaneseq
        %v1836 = vshrl.u32 %v1835, 7
        %v1837 = vsub.s32 0, %v1836
        %v1838 = vrot.slane %v1832, %v1837
        %v1839 = vlaneseq
        %v1840 = vshrl.u32 %v1839, 7
        %v1841 = vsub.s32 0, %v1840
        %v1842 = vrot.slane %v1834, %v1841
        %v1843 = vmul.f32 %v517, %v1838
        %v1844 = vmul.f32 %v518, %v1842
        %v1845 = vmul.f32 %v519, %v1838
        %v1846 = vmul.f32 %v520, %v1842
        %v1847 = vmul.f32 %v521, %v1838
        %v1848 = vmul.f32 %v522, %v1842
        %v1849 = vmul.f32 %v523, %v1838
        %v1850 = vmul.f32 %v524, %v1842
        %1851 = vst [vmem:[%s229] sm:$0xff] %v1843
        %1852 = vst [vmem:[%s229 + $0x8] sm:$0xff] %v1844
        %1853 = vst [vmem:[%s229 + $0x10] sm:$0xff] %v1845
        %1854 = vst [vmem:[%s229 + $0x18] sm:$0xff] %v1846
        %1855 = vst [vmem:[%s229 + $0x20] sm:$0xff] %v1847
        %1856 = vst [vmem:[%s229 + $0x28] sm:$0xff] %v1848
        %1857 = vst [vmem:[%s229 + $0x30] sm:$0xff] %v1849
        %1858 = vst [vmem:[%s229 + $0x38] sm:$0xff] %v1850
        %s1859 = sand.u32 %s119, 1
        %s1860 = scalar_lea.sflag [#allocation5], %s1859
        %s1861 = sand.u32 %s119, 1
        %s1862 = smul.addr %s1861, 64
        %s1863 = scalar_lea.vmem [#allocation8], %s1862
        // Predicated region
        $region45: #{tpu_custom_call.1} parent=35 // pred_check
          %p1864 = pneg %p129
        $region46: #{tpu_custom_call.1} parent=35 // pred_check_branch
          %1866 = sbr.rel (%p1864) target = $region48
        $region47: #{tpu_custom_call.1} parent=35 // pred_region
          %s1868 = ssub.s32 1024, 1024
          %1869 = vsyncadd %s1860, %s1868
          %s1870 = smul.addr %s22, 8
          %s1871 = smul.addr %s1870, 128
          %s1872 = scalar_lea.hbm %s4, %s1871
          %s1873 = sshll.u32 %s1863, 4
          %s1874 = int_to_ptr.vmem [resolvable:$true] %s1873
          %1879 = dma.vmem_to_hbm [thread:$0]  %s1874, 1024, %s1872, %s1860, 256, 256, 16
        $region48: #{tpu_custom_call.1} parent=35 // pred_fallthru
          _
      $region36: #{tpu_custom_call.1} parent=5 // pred_fallthru
        _
      %p1880 = scmp.le.s32.totalorder 2, %s17
      // Predicated region
      $region49: #{tpu_custom_call.1} parent=5 // pred_check
        %p1881 = pneg %p1880
      $region50: #{tpu_custom_call.1} parent=5 // pred_check_branch
        %1883 = sbr.rel (%p1881) target = $region52
      $region51: #{tpu_custom_call.1} parent=5 // pred_region
        %s1884 = ssub.s32 %s17, 2
        // Predicated region
        $region53: #{tpu_custom_call.1} parent=51 // pred_check
          %p1885 = pneg %p135
        $region54: #{tpu_custom_call.1} parent=51 // pred_check_branch
          %1887 = sbr.rel (%p1885) target = $region56
        $region55: #{tpu_custom_call.1} parent=51 // pred_region
          %s1888 = sand.u32 %s120, 1
          %s1889 = scalar_lea.sflag [#allocation5], %s1888
          %s1890 = sand.u32 %s120, 1
          %s1891 = smul.addr %s1890, 64
          %s1892 = scalar_lea.vmem [#allocation8], %s1891
          %1893 = dma.done %s1889, 1024
        $region56: #{tpu_custom_call.1} parent=51 // pred_fallthru
          _
      $region52: #{tpu_custom_call.1} parent=5 // pred_fallthru
        _
    $region6: #{tpu_custom_call.1} parent=1 // loop_footer
      %s21 = sadd.s32 1, %s17
    $region7: #{tpu_custom_call.1} parent=1 // loop_footer_branch
      %16 = sbr.rel target = $region3
    $region8: #{tpu_custom_call.1} parent=1 // loop_exit
      _
    %1894 = vsyncpa [#allocation4], 1
    %s1895 = scalar_lea.sflag [#allocation4], 1
    %1896 = vsyncpa %s1895, 1
    %1897 = vsyncpa [#allocation5], 1
    %s1898 = scalar_lea.sflag [#allocation5], 1
    %1899 = vsyncpa %s1898, 1
    %1900 = vsyncpa [#allocation6], 1
    %s1901 = scalar_lea.sflag [#allocation6], 1
    %1902 = vsyncpa %s1901, 1

</llo_original>
